<compile_context>
chip_gen: v7x
topology: tpu7x:2x2x1
jax: 0.10.0
libtpu: 0.0.40
codegen_flags: <defaults>
</compile_context>

<pallas_src>
import functools

import jax
import jax.numpy as jnp
import numpy as np
from jax.experimental import pallas as pl
from jax.experimental.pallas import tpu as pltpu


def _make_act(name):
    if name == "tanh":
        return jnp.tanh
    elif name == "relu":
        return lambda x: jnp.maximum(x, 0.0)
    raise Exception("Unknown activation function")


# ----------------------------------------------------------------------------
# im2col (wrapper-side layout plumbing, NCHW, VALID, stride 1).
# patches[b, k, p] = x[b, c, oy+dy, ox+dx] with k = (c, dy, dx) row-major
# (matching the OIHW conv-weight flatten) and p = (oy, ox) row-major
# (matching PyTorch's channel-major view(B, -1) pixel order).
# ----------------------------------------------------------------------------
def _im2col_nchw(x, ks):
    B, C, H, W = x.shape
    OH, OW = H - ks + 1, W - ks + 1
    cols = [x[:, c, dy:dy + OH, dx:dx + OW].reshape(B, 1, OH * OW)
            for c in range(C) for dy in range(ks) for dx in range(ks)]
    return jnp.concatenate(cols, axis=1)            # (B, C*ks*ks, OH*OW)


def _mlp_tail(h1, w2_ref, b2_ref, w3t_ref, b3_ref, act):
    """l2 -> act -> l3, with l3 as a lane-axis VPU reduction (no N=1 matmul)."""
    h2 = act(jnp.dot(h1, w2_ref[...], preferred_element_type=jnp.float32)
             + b2_ref[...])
    return jnp.sum(h2 * w3t_ref[...], axis=-1, keepdims=True) + b3_ref[...]


# ----------------------------------------------------------------------------
# Fused kernel (conv path): conv0 + act + l1 + act + l2 + act + l3.
# One launch, whole batch in one block, everything VMEM-resident (< 1 MiB).
# ----------------------------------------------------------------------------
def fused_conv_mlp_kernel(patches_ref, wc_ref, bc_ref, w1r_ref, b1_ref,
                          w2_ref, b2_ref, w3t_ref, b3_ref, o_ref, *, act):
    B = patches_ref.shape[0]
    OC = wc_ref.shape[0]

    wflat = wc_ref[...]                              # (OC, C*ks*ks)
    bc = bc_ref[...]                                 # (OC, 1)

    # conv0: one K=C*ks*ks matmul per image; OH*OW sits on the lane axis and
    # row c of the result is exactly channel c of the NCHW conv output.
    convs = []
    for b in range(B):
        c_pre = jnp.dot(wflat, patches_ref[b],
                        preferred_element_type=jnp.float32)   # (OC, OH*OW)
        convs.append(act(c_pre + bc))

    # l1 with the channel-major flatten folded in: w1 is viewed as
    # (OC, OH*OW, 64) and the contraction is summed over conv channels, so no
    # in-kernel transpose / lane-changing flatten is ever materialized.
    h1 = b1_ref[...].astype(jnp.float32)             # (1, 64), broadcasts
    for c in range(OC):
        lhs = jnp.concatenate([convs[b][c:c + 1, :] for b in range(B)],
                              axis=0)                # (B, OH*OW)
        h1 = h1 + jnp.dot(lhs, w1r_ref[c],
                          preferred_element_type=jnp.float32)
    h1 = act(h1)

    out = _mlp_tail(h1, w2_ref, b2_ref, w3t_ref, b3_ref, act)
    o_ref[...] = out.astype(o_ref.dtype)


# ----------------------------------------------------------------------------
# Fused kernel (non-conv path): l1 + act + l2 + act + l3.
# ----------------------------------------------------------------------------
def mlp_kernel(x_ref, w1_ref, b1_ref, w2_ref, b2_ref, w3t_ref, b3_ref, o_ref,
               *, act):
    h1 = act(jnp.dot(x_ref[...], w1_ref[...],
                     preferred_element_type=jnp.float32) + b1_ref[...])
    out = _mlp_tail(h1, w2_ref, b2_ref, w3t_ref, b3_ref, act)
    o_ref[...] = out.astype(o_ref.dtype)


# ----------------------------------------------------------------------------
# Parameter init (deterministic, synthetic; mirrors the shapes in __init__).
# conv weight kept in PyTorch OIHW layout.
# ----------------------------------------------------------------------------
def init_params(key, matrix_size, num_channels, is_conv,
                conv_out=8, ks=3, stride=1):
    keys = jax.random.split(key, 8)
    params = {}
    if is_conv:
        fan_in = num_channels * ks * ks
        params["conv_w"] = (
            jax.random.normal(keys[0], (conv_out, num_channels, ks, ks),
                              jnp.float32) / np.sqrt(fan_in))
        params["conv_b"] = (
            jax.random.normal(keys[1], (conv_out, 1), jnp.float32) * 0.01)
        n = int((matrix_size - ks) / stride + 1)
        f_in = conv_out * n * n
    else:
        f_in = num_channels * matrix_size * matrix_size
    params["w1"] = jax.random.normal(keys[2], (f_in, 64), jnp.float32) / np.sqrt(f_in)
    params["b1"] = jax.random.normal(keys[3], (1, 64), jnp.float32) * 0.01
    params["w2"] = jax.random.normal(keys[4], (64, 32), jnp.float32) / np.sqrt(64)
    params["b2"] = jax.random.normal(keys[5], (1, 32), jnp.float32) * 0.01
    params["w3"] = jax.random.normal(keys[6], (32, 1), jnp.float32) / np.sqrt(32)
    params["b3"] = jax.random.normal(keys[7], (1, 1), jnp.float32) * 0.01
    return params


# ----------------------------------------------------------------------------
# Forward pass: one pallas_call for the whole network.
# ----------------------------------------------------------------------------
def mlp_value_forward(obs_nchw, params, is_conv, activation_function):
    if obs_nchw.ndim != 4:
        raise Exception("Input tensor should have dim = 4")
    act = _make_act(activation_function)
    B = obs_nchw.shape[0]

    w3t = params["w3"].reshape(1, -1)                # (1, 32)

    def full_spec(a):
        return pl.BlockSpec(a.shape, lambda i, n=a.ndim: (0,) * n)

    if is_conv:
        wc = params["conv_w"]                        # (OC, C, ks, ks)
        OC, C, ks, _ = wc.shape
        OH = obs_nchw.shape[2] - ks + 1
        OW = obs_nchw.shape[3] - ks + 1
        patches = _im2col_nchw(obs_nchw, ks)         # (B, C*ks*ks, OH*OW)
        wc_flat = wc.reshape(OC, C * ks * ks)
        # w1 rows grouped by conv output channel: (OC, OH*OW, 64).
        w1r = params["w1"].reshape(OC, OH * OW, -1)
        args = (patches, wc_flat, params["conv_b"], w1r, params["b1"],
                params["w2"], params["b2"], w3t, params["b3"])
        kernel = functools.partial(fused_conv_mlp_kernel, act=act)
    else:
        flat = obs_nchw.reshape(B, -1)
        args = (flat, params["w1"], params["b1"], params["w2"], params["b2"],
                w3t, params["b3"])
        kernel = functools.partial(mlp_kernel, act=act)

    # Single grid step: the whole working set (< 1 MiB) is VMEM-resident.
    # TODO(synk): if batch grows to thousands of rows, tile the batch over a
    # "parallel" grid axis (and split it across the two v7x TensorCores).
    return pl.pallas_call(
        kernel,
        out_shape=jax.ShapeDtypeStruct((B, 1), jnp.float32),
        grid=(1,),
        in_specs=[full_spec(a) for a in args],
        out_specs=pl.BlockSpec((B, 1), lambda i: (0, 0)),
        compiler_params=pltpu.CompilerParams(
            dimension_semantics=("arbitrary",)),
    )(*args)


# ----------------------------------------------------------------------------
# Pure-JAX reference (numeric sanity check against the kernels).
# ----------------------------------------------------------------------------
def mlp_value_reference(obs_nchw, params, is_conv, activation_function):
    act = _make_act(activation_function)
    B = obs_nchw.shape[0]
    if is_conv:
        y = jax.lax.conv_general_dilated(
            obs_nchw, params["conv_w"], window_strides=(1, 1), padding="VALID",
            dimension_numbers=("NCHW", "OIHW", "NCHW"))
        y = act(y + params["conv_b"].reshape(1, -1, 1, 1))
        flat = y.reshape(B, -1)
    else:
        flat = obs_nchw.reshape(B, -1)
    h = act(flat @ params["w1"] + params["b1"])
    h = act(h @ params["w2"] + params["b2"])
    return h @ params["w3"] + params["b3"]


if __name__ == "__main__":
    matrix_size = 16
    num_channels = 4
    batch = 2
    activation = "tanh"

    key = jax.random.PRNGKey(0)
    k_obs, k_par1, k_par2 = jax.random.split(key, 3)
    obs = jax.random.normal(
        k_obs, (batch, num_channels, matrix_size, matrix_size), jnp.float32)

    fwd = jax.jit(mlp_value_forward, static_argnums=(2, 3))

    # Conv path (is_conv=True).
    params_c = init_params(k_par1, matrix_size, num_channels, True)
    out_c = jax.block_until_ready(fwd(obs, params_c, True, activation))
    ref_c = jax.block_until_ready(
        mlp_value_reference(obs, params_c, True, activation))
    np.testing.assert_allclose(np.asarray(out_c), np.asarray(ref_c),
                               rtol=1e-4, atol=1e-4)
    assert out_c.shape == (batch, 1)

    # Non-conv path (is_conv=False).
    params_m = init_params(k_par2, matrix_size, num_channels, False)
    out_m = jax.block_until_ready(fwd(obs, params_m, False, activation))
    ref_m = jax.block_until_ready(
        mlp_value_reference(obs, params_m, False, activation))
    np.testing.assert_allclose(np.asarray(out_m), np.asarray(ref_m),
                               rtol=1e-4, atol=1e-4)
    assert out_m.shape == (batch, 1)

    print("KERNEL_OK")
</pallas_src>

<mosaic_0001>
module attributes {stable_mosaic.version = 11 : i64} {
  func.func @fused_conv_mlp_kernel(%arg0: i32, %arg1: memref<2x36x196xf32, #tpu.memory_space<vmem>>, %arg2: memref<8x36xf32, #tpu.memory_space<vmem>>, %arg3: memref<8x1xf32, #tpu.memory_space<vmem>>, %arg4: memref<8x196x64xf32, #tpu.memory_space<vmem>>, %arg5: memref<1x64xf32, #tpu.memory_space<vmem>>, %arg6: memref<64x32xf32, #tpu.memory_space<vmem>>, %arg7: memref<1x32xf32, #tpu.memory_space<vmem>>, %arg8: memref<1x32xf32, #tpu.memory_space<vmem>>, %arg9: memref<1x1xf32, #tpu.memory_space<vmem>>, %arg10: memref<2x1xf32, #tpu.memory_space<vmem>>) attributes {dimension_semantics = [#tpu.dimension_semantics<arbitrary>], iteration_bounds = array<i64: 1>, scalar_prefetch = 0 : i64, scratch_operands = 0 : i64, tpu.core_type = #tpu.core_type<tc>, window_params = [{pipeline_mode = #tpu.pipeline_mode<synchronous>, transform_indices = @transform_0, window_bounds = array<i64: 2, 36, 196>}, {pipeline_mode = #tpu.pipeline_mode<synchronous>, transform_indices = @transform_1, window_bounds = array<i64: 8, 36>}, {pipeline_mode = #tpu.pipeline_mode<synchronous>, transform_indices = @transform_2, window_bounds = array<i64: 8, 1>}, {pipeline_mode = #tpu.pipeline_mode<synchronous>, transform_indices = @transform_3, window_bounds = array<i64: 8, 196, 64>}, {pipeline_mode = #tpu.pipeline_mode<synchronous>, transform_indices = @transform_4, window_bounds = array<i64: 1, 64>}, {pipeline_mode = #tpu.pipeline_mode<synchronous>, transform_indices = @transform_5, window_bounds = array<i64: 64, 32>}, {pipeline_mode = #tpu.pipeline_mode<synchronous>, transform_indices = @transform_6, window_bounds = array<i64: 1, 32>}, {pipeline_mode = #tpu.pipeline_mode<synchronous>, transform_indices = @transform_7, window_bounds = array<i64: 1, 32>}, {pipeline_mode = #tpu.pipeline_mode<synchronous>, transform_indices = @transform_8, window_bounds = array<i64: 1, 1>}, {pipeline_mode = #tpu.pipeline_mode<synchronous>, transform_indices = @transform_9, window_bounds = array<i64: 2, 1>}]} {
    %c0 = arith.constant 0 : index
    %c0_0 = arith.constant 0 : index
    %0 = vector.load %arg2[%c0, %c0_0] : memref<8x36xf32, #tpu.memory_space<vmem>>, vector<8x36xf32>
    %c0_1 = arith.constant 0 : index
    %c0_2 = arith.constant 0 : index
    %1 = vector.load %arg3[%c0_1, %c0_2] : memref<8x1xf32, #tpu.memory_space<vmem>>, vector<8x1xf32>
    %c0_3 = arith.constant 0 : index
    %c0_4 = arith.constant 0 : index
    %c0_5 = arith.constant 0 : index
    %2 = vector.load %arg1[%c0_3, %c0_4, %c0_5] : memref<2x36x196xf32, #tpu.memory_space<vmem>>, vector<1x36x196xf32>
    %3 = vector.shape_cast %2 : vector<1x36x196xf32> to vector<36x196xf32>
    %cst = arith.constant dense<0.000000e+00> : vector<8x196xf32>
    %4 = tpu.matmul %0, %3, %cst {dimension_numbers = #tpu.dot_dimension_numbers<[1], [0], [0], [1], [0, 0, 1, 1], [], []>} : vector<8x36xf32>, vector<36x196xf32>, vector<8x196xf32> -> vector<8x196xf32>
    %5 = vector.broadcast %1 : vector<8x1xf32> to vector<8x196xf32>
    %6 = arith.addf %4, %5 : vector<8x196xf32>
    %7 = math.tanh %6 : vector<8x196xf32>
    %c1 = arith.constant 1 : index
    %c0_6 = arith.constant 0 : index
    %c0_7 = arith.constant 0 : index
    %8 = vector.load %arg1[%c1, %c0_6, %c0_7] : memref<2x36x196xf32, #tpu.memory_space<vmem>>, vector<1x36x196xf32>
    %9 = vector.shape_cast %8 : vector<1x36x196xf32> to vector<36x196xf32>
    %cst_8 = arith.constant dense<0.000000e+00> : vector<8x196xf32>
    %10 = tpu.matmul %0, %9, %cst_8 {dimension_numbers = #tpu.dot_dimension_numbers<[1], [0], [0], [1], [0, 0, 1, 1], [], []>} : vector<8x36xf32>, vector<36x196xf32>, vector<8x196xf32> -> vector<8x196xf32>
    %11 = vector.broadcast %1 : vector<8x1xf32> to vector<8x196xf32>
    %12 = arith.addf %10, %11 : vector<8x196xf32>
    %13 = math.tanh %12 : vector<8x196xf32>
    %c0_9 = arith.constant 0 : index
    %c0_10 = arith.constant 0 : index
    %14 = vector.load %arg5[%c0_9, %c0_10] : memref<1x64xf32, #tpu.memory_space<vmem>>, vector<1x64xf32>
    %15 = vector.extract_strided_slice %7 {offsets = [0, 0], sizes = [1, 196], strides = [1, 1]} : vector<8x196xf32> to vector<1x196xf32>
    %16 = vector.extract_strided_slice %13 {offsets = [0, 0], sizes = [1, 196], strides = [1, 1]} : vector<8x196xf32> to vector<1x196xf32>
    %17 = tpu.concatenate %15, %16 in 0 : vector<1x196xf32>, vector<1x196xf32> -> vector<2x196xf32>
    %c0_11 = arith.constant 0 : index
    %c0_12 = arith.constant 0 : index
    %c0_13 = arith.constant 0 : index
    %18 = vector.load %arg4[%c0_11, %c0_12, %c0_13] : memref<8x196x64xf32, #tpu.memory_space<vmem>>, vector<1x196x64xf32>
    %19 = vector.shape_cast %18 : vector<1x196x64xf32> to vector<196x64xf32>
    %cst_14 = arith.constant dense<0.000000e+00> : vector<2x64xf32>
    %20 = tpu.matmul %17, %19, %cst_14 {dimension_numbers = #tpu.dot_dimension_numbers<[1], [0], [0], [1], [0, 0, 1, 1], [], []>} : vector<2x196xf32>, vector<196x64xf32>, vector<2x64xf32> -> vector<2x64xf32>
    %21 = vector.broadcast %14 : vector<1x64xf32> to vector<2x64xf32>
    %22 = arith.addf %21, %20 : vector<2x64xf32>
    %23 = vector.extract_strided_slice %7 {offsets = [1, 0], sizes = [1, 196], strides = [1, 1]} : vector<8x196xf32> to vector<1x196xf32>
    %24 = vector.extract_strided_slice %13 {offsets = [1, 0], sizes = [1, 196], strides = [1, 1]} : vector<8x196xf32> to vector<1x196xf32>
    %25 = tpu.concatenate %23, %24 in 0 : vector<1x196xf32>, vector<1x196xf32> -> vector<2x196xf32>
    %c1_15 = arith.constant 1 : index
    %c0_16 = arith.constant 0 : index
    %c0_17 = arith.constant 0 : index
    %26 = vector.load %arg4[%c1_15, %c0_16, %c0_17] : memref<8x196x64xf32, #tpu.memory_space<vmem>>, vector<1x196x64xf32>
    %27 = vector.shape_cast %26 : vector<1x196x64xf32> to vector<196x64xf32>
    %cst_18 = arith.constant dense<0.000000e+00> : vector<2x64xf32>
    %28 = tpu.matmul %25, %27, %cst_18 {dimension_numbers = #tpu.dot_dimension_numbers<[1], [0], [0], [1], [0, 0, 1, 1], [], []>} : vector<2x196xf32>, vector<196x64xf32>, vector<2x64xf32> -> vector<2x64xf32>
    %29 = arith.addf %22, %28 : vector<2x64xf32>
    %30 = vector.extract_strided_slice %7 {offsets = [2, 0], sizes = [1, 196], strides = [1, 1]} : vector<8x196xf32> to vector<1x196xf32>
    %31 = vector.extract_strided_slice %13 {offsets = [2, 0], sizes = [1, 196], strides = [1, 1]} : vector<8x196xf32> to vector<1x196xf32>
    %32 = tpu.concatenate %30, %31 in 0 : vector<1x196xf32>, vector<1x196xf32> -> vector<2x196xf32>
    %c2 = arith.constant 2 : index
    %c0_19 = arith.constant 0 : index
    %c0_20 = arith.constant 0 : index
    %33 = vector.load %arg4[%c2, %c0_19, %c0_20] : memref<8x196x64xf32, #tpu.memory_space<vmem>>, vector<1x196x64xf32>
    %34 = vector.shape_cast %33 : vector<1x196x64xf32> to vector<196x64xf32>
    %cst_21 = arith.constant dense<0.000000e+00> : vector<2x64xf32>
    %35 = tpu.matmul %32, %34, %cst_21 {dimension_numbers = #tpu.dot_dimension_numbers<[1], [0], [0], [1], [0, 0, 1, 1], [], []>} : vector<2x196xf32>, vector<196x64xf32>, vector<2x64xf32> -> vector<2x64xf32>
    %36 = arith.addf %29, %35 : vector<2x64xf32>
    %37 = vector.extract_strided_slice %7 {offsets = [3, 0], sizes = [1, 196], strides = [1, 1]} : vector<8x196xf32> to vector<1x196xf32>
    %38 = vector.extract_strided_slice %13 {offsets = [3, 0], sizes = [1, 196], strides = [1, 1]} : vector<8x196xf32> to vector<1x196xf32>
    %39 = tpu.concatenate %37, %38 in 0 : vector<1x196xf32>, vector<1x196xf32> -> vector<2x196xf32>
    %c3 = arith.constant 3 : index
    %c0_22 = arith.constant 0 : index
    %c0_23 = arith.constant 0 : index
    %40 = vector.load %arg4[%c3, %c0_22, %c0_23] : memref<8x196x64xf32, #tpu.memory_space<vmem>>, vector<1x196x64xf32>
    %41 = vector.shape_cast %40 : vector<1x196x64xf32> to vector<196x64xf32>
    %cst_24 = arith.constant dense<0.000000e+00> : vector<2x64xf32>
    %42 = tpu.matmul %39, %41, %cst_24 {dimension_numbers = #tpu.dot_dimension_numbers<[1], [0], [0], [1], [0, 0, 1, 1], [], []>} : vector<2x196xf32>, vector<196x64xf32>, vector<2x64xf32> -> vector<2x64xf32>
    %43 = arith.addf %36, %42 : vector<2x64xf32>
    %44 = vector.extract_strided_slice %7 {offsets = [4, 0], sizes = [1, 196], strides = [1, 1]} : vector<8x196xf32> to vector<1x196xf32>
    %45 = vector.extract_strided_slice %13 {offsets = [4, 0], sizes = [1, 196], strides = [1, 1]} : vector<8x196xf32> to vector<1x196xf32>
    %46 = tpu.concatenate %44, %45 in 0 : vector<1x196xf32>, vector<1x196xf32> -> vector<2x196xf32>
    %c4 = arith.constant 4 : index
    %c0_25 = arith.constant 0 : index
    %c0_26 = arith.constant 0 : index
    %47 = vector.load %arg4[%c4, %c0_25, %c0_26] : memref<8x196x64xf32, #tpu.memory_space<vmem>>, vector<1x196x64xf32>
    %48 = vector.shape_cast %47 : vector<1x196x64xf32> to vector<196x64xf32>
    %cst_27 = arith.constant dense<0.000000e+00> : vector<2x64xf32>
    %49 = tpu.matmul %46, %48, %cst_27 {dimension_numbers = #tpu.dot_dimension_numbers<[1], [0], [0], [1], [0, 0, 1, 1], [], []>} : vector<2x196xf32>, vector<196x64xf32>, vector<2x64xf32> -> vector<2x64xf32>
    %50 = arith.addf %43, %49 : vector<2x64xf32>
    %51 = vector.extract_strided_slice %7 {offsets = [5, 0], sizes = [1, 196], strides = [1, 1]} : vector<8x196xf32> to vector<1x196xf32>
    %52 = vector.extract_strided_slice %13 {offsets = [5, 0], sizes = [1, 196], strides = [1, 1]} : vector<8x196xf32> to vector<1x196xf32>
    %53 = tpu.concatenate %51, %52 in 0 : vector<1x196xf32>, vector<1x196xf32> -> vector<2x196xf32>
    %c5 = arith.constant 5 : index
    %c0_28 = arith.constant 0 : index
    %c0_29 = arith.constant 0 : index
    %54 = vector.load %arg4[%c5, %c0_28, %c0_29] : memref<8x196x64xf32, #tpu.memory_space<vmem>>, vector<1x196x64xf32>
    %55 = vector.shape_cast %54 : vector<1x196x64xf32> to vector<196x64xf32>
    %cst_30 = arith.constant dense<0.000000e+00> : vector<2x64xf32>
    %56 = tpu.matmul %53, %55, %cst_30 {dimension_numbers = #tpu.dot_dimension_numbers<[1], [0], [0], [1], [0, 0, 1, 1], [], []>} : vector<2x196xf32>, vector<196x64xf32>, vector<2x64xf32> -> vector<2x64xf32>
    %57 = arith.addf %50, %56 : vector<2x64xf32>
    %58 = vector.extract_strided_slice %7 {offsets = [6, 0], sizes = [1, 196], strides = [1, 1]} : vector<8x196xf32> to vector<1x196xf32>
    %59 = vector.extract_strided_slice %13 {offsets = [6, 0], sizes = [1, 196], strides = [1, 1]} : vector<8x196xf32> to vector<1x196xf32>
    %60 = tpu.concatenate %58, %59 in 0 : vector<1x196xf32>, vector<1x196xf32> -> vector<2x196xf32>
    %c6 = arith.constant 6 : index
    %c0_31 = arith.constant 0 : index
    %c0_32 = arith.constant 0 : index
    %61 = vector.load %arg4[%c6, %c0_31, %c0_32] : memref<8x196x64xf32, #tpu.memory_space<vmem>>, vector<1x196x64xf32>
    %62 = vector.shape_cast %61 : vector<1x196x64xf32> to vector<196x64xf32>
    %cst_33 = arith.constant dense<0.000000e+00> : vector<2x64xf32>
    %63 = tpu.matmul %60, %62, %cst_33 {dimension_numbers = #tpu.dot_dimension_numbers<[1], [0], [0], [1], [0, 0, 1, 1], [], []>} : vector<2x196xf32>, vector<196x64xf32>, vector<2x64xf32> -> vector<2x64xf32>
    %64 = arith.addf %57, %63 : vector<2x64xf32>
    %65 = vector.extract_strided_slice %7 {offsets = [7, 0], sizes = [1, 196], strides = [1, 1]} : vector<8x196xf32> to vector<1x196xf32>
    %66 = vector.extract_strided_slice %13 {offsets = [7, 0], sizes = [1, 196], strides = [1, 1]} : vector<8x196xf32> to vector<1x196xf32>
    %67 = tpu.concatenate %65, %66 in 0 : vector<1x196xf32>, vector<1x196xf32> -> vector<2x196xf32>
    %c7 = arith.constant 7 : index
    %c0_34 = arith.constant 0 : index
    %c0_35 = arith.constant 0 : index
    %68 = vector.load %arg4[%c7, %c0_34, %c0_35] : memref<8x196x64xf32, #tpu.memory_space<vmem>>, vector<1x196x64xf32>
    %69 = vector.shape_cast %68 : vector<1x196x64xf32> to vector<196x64xf32>
    %cst_36 = arith.constant dense<0.000000e+00> : vector<2x64xf32>
    %70 = tpu.matmul %67, %69, %cst_36 {dimension_numbers = #tpu.dot_dimension_numbers<[1], [0], [0], [1], [0, 0, 1, 1], [], []>} : vector<2x196xf32>, vector<196x64xf32>, vector<2x64xf32> -> vector<2x64xf32>
    %71 = arith.addf %64, %70 : vector<2x64xf32>
    %72 = math.tanh %71 : vector<2x64xf32>
    %c0_37 = arith.constant 0 : index
    %c0_38 = arith.constant 0 : index
    %73 = vector.load %arg6[%c0_37, %c0_38] : memref<64x32xf32, #tpu.memory_space<vmem>>, vector<64x32xf32>
    %cst_39 = arith.constant dense<0.000000e+00> : vector<2x32xf32>
    %74 = tpu.matmul %72, %73, %cst_39 {dimension_numbers = #tpu.dot_dimension_numbers<[1], [0], [0], [1], [0, 0, 1, 1], [], []>} : vector<2x64xf32>, vector<64x32xf32>, vector<2x32xf32> -> vector<2x32xf32>
    %c0_40 = arith.constant 0 : index
    %c0_41 = arith.constant 0 : index
    %75 = vector.load %arg7[%c0_40, %c0_41] : memref<1x32xf32, #tpu.memory_space<vmem>>, vector<1x32xf32>
    %76 = vector.broadcast %75 : vector<1x32xf32> to vector<2x32xf32>
    %77 = arith.addf %74, %76 : vector<2x32xf32>
    %78 = math.tanh %77 : vector<2x32xf32>
    %c0_42 = arith.constant 0 : index
    %c0_43 = arith.constant 0 : index
    %79 = vector.load %arg8[%c0_42, %c0_43] : memref<1x32xf32, #tpu.memory_space<vmem>>, vector<1x32xf32>
    %80 = vector.broadcast %79 : vector<1x32xf32> to vector<2x32xf32>
    %81 = arith.mulf %78, %80 : vector<2x32xf32>
    %cst_44 = arith.constant dense<0.000000e+00> : vector<2xf32>
    %82 = vector.multi_reduction <add>, %81, %cst_44 [1] : vector<2x32xf32> to vector<2xf32>
    %83 = vector.shape_cast %82 : vector<2xf32> to vector<2x1xf32>
    %c0_45 = arith.constant 0 : index
    %c0_46 = arith.constant 0 : index
    %84 = vector.load %arg9[%c0_45, %c0_46] : memref<1x1xf32, #tpu.memory_space<vmem>>, vector<1x1xf32>
    %85 = vector.broadcast %84 : vector<1x1xf32> to vector<2x1xf32>
    %86 = arith.addf %83, %85 : vector<2x1xf32>
    %c0_47 = arith.constant 0 : index
    %c0_48 = arith.constant 0 : index
    %87 = vector.load %arg10[%c0_47, %c0_48] : memref<2x1xf32, #tpu.memory_space<vmem>>, vector<2x1xf32>
    tpu.vector_store %arg10[%c0_47, %c0_48], %86 {strides = array<i32>} : memref<2x1xf32, #tpu.memory_space<vmem>>, vector<2x1xf32>,
    return
  }
  func.func @transform_0(%arg0: i32) -> (i32, i32, i32) {
    %c0_i32 = arith.constant 0 : i32
    %c0_i32_0 = arith.constant 0 : i32
    %c0_i32_1 = arith.constant 0 : i32
    %c0_i32_2 = arith.constant 0 : i32
    return %c0_i32, %c0_i32_0, %c0_i32_1 : i32, i32, i32
  }
  func.func @transform_1(%arg0: i32) -> (i32, i32) {
    %c0_i32 = arith.constant 0 : i32
    %c0_i32_0 = arith.constant 0 : i32
    %c0_i32_1 = arith.constant 0 : i32
    return %c0_i32, %c0_i32_0 : i32, i32
  }
  func.func @transform_2(%arg0: i32) -> (i32, i32) {
    %c0_i32 = arith.constant 0 : i32
    %c0_i32_0 = arith.constant 0 : i32
    %c0_i32_1 = arith.constant 0 : i32
    return %c0_i32, %c0_i32_0 : i32, i32
  }
  func.func @transform_3(%arg0: i32) -> (i32, i32, i32) {
    %c0_i32 = arith.constant 0 : i32
    %c0_i32_0 = arith.constant 0 : i32
    %c0_i32_1 = arith.constant 0 : i32
    %c0_i32_2 = arith.constant 0 : i32
    return %c0_i32, %c0_i32_0, %c0_i32_1 : i32, i32, i32
  }
  func.func @transform_4(%arg0: i32) -> (i32, i32) {
    %c0_i32 = arith.constant 0 : i32
    %c0_i32_0 = arith.constant 0 : i32
    %c0_i32_1 = arith.constant 0 : i32
    return %c0_i32, %c0_i32_0 : i32, i32
  }
  func.func @transform_5(%arg0: i32) -> (i32, i32) {
    %c0_i32 = arith.constant 0 : i32
    %c0_i32_0 = arith.constant 0 : i32
    %c0_i32_1 = arith.constant 0 : i32
    return %c0_i32, %c0_i32_0 : i32, i32
  }
  func.func @transform_6(%arg0: i32) -> (i32, i32) {
    %c0_i32 = arith.constant 0 : i32
    %c0_i32_0 = arith.constant 0 : i32
    %c0_i32_1 = arith.constant 0 : i32
    return %c0_i32, %c0_i32_0 : i32, i32
  }
  func.func @transform_7(%arg0: i32) -> (i32, i32) {
    %c0_i32 = arith.constant 0 : i32
    %c0_i32_0 = arith.constant 0 : i32
    %c0_i32_1 = arith.constant 0 : i32
    return %c0_i32, %c0_i32_0 : i32, i32
  }
  func.func @transform_8(%arg0: i32) -> (i32, i32) {
    %c0_i32 = arith.constant 0 : i32
    %c0_i32_0 = arith.constant 0 : i32
    %c0_i32_1 = arith.constant 0 : i32
    return %c0_i32, %c0_i32_0 : i32, i32
  }
  func.func @transform_9(%arg0: i32) -> (i32, i32) {
    %c0_i32 = arith.constant 0 : i32
    %c0_i32_0 = arith.constant 0 : i32
    %c0_i32_1 = arith.constant 0 : i32
    return %c0_i32, %c0_i32_0 : i32, i32
  }
}

</mosaic_0001>

<llo_original>
// kernel: squeeze.53
$region0: #{squeeze.53}
  %s0 = inlined_call_operand.vmem [shape: f32[2,1,14,14], index: 0, kind: input, shape index: {}]
  %s1 = inlined_call_operand.vmem [shape: f32[2,1,196], index: 1, kind: output, shape index: {}]
  $region1: #{squeeze.53} parent=0
    #allocation0 [shape = 'u8[16384]{0}', space=vmem, size = 0x4000, scoped, tag = 'scoped mem for output reshape']
    %s2 = smov 3
    %v3 = vld [vmem:[%s0] ss:$16 sm:%s2]
    %vm4 = vcmask 113664
    %5 = vst.msk [vmem:[#allocation0] ss:$16 sm:$0x3] %vm4, %v3
    %s6 = scalar_lea.vmem %s0, 9
    %s7 = smov 3
    %v8 = vld [vmem:[%s6] ss:$16 sm:%s7]
    %s9 = scalar_lea.vmem %s0, 9
    %s10 = smov 3
    %v11 = vld [vmem:[%s9] ss:$16 sm:%s10]
    %vm12 = vcmask 15360
    %v13 = vsel %vm12, %v11, %v8
    %14 = vrot.lane.b32.xlu0 %v13, 126
    %v15 = vpop.permute.xlu0 %14
    %vm16 = vcmask 97280
    %s17 = scalar_lea.vmem [#allocation0], 8
    %18 = vst.msk [vmem:[%s17] ss:$16 sm:$0x3] %vm16, %v15
    %vm19 = vcmask 1048560
    %20 = vst.msk [vmem:[#allocation0] ss:$16 sm:$0x3] %vm19, %v15
    %s21 = scalar_lea.vmem %s0, 8
    %s22 = smov 3
    %v23 = vld [vmem:[%s21] ss:$16 sm:%s22]
    %24 = vrot.lane.b32.xlu0 %v23, 112
    %v25 = vpop.permute.xlu0 %24
    %vm26 = vcmask 1032064
    %27 = vst.msk [vmem:[#allocation0] ss:$16 sm:$0x3] %vm26, %v25
    %s28 = scalar_lea.vmem %s0, 7
    %s29 = smov 3
    %v30 = vld [vmem:[%s28] ss:$16 sm:%s29]
    %31 = vrot.lane.b32.xlu0 %v30, 98
    %v32 = vpop.permute.xlu0 %31
    %vm33 = vcmask 917264
    %34 = vst.msk [vmem:[#allocation0] ss:$16 sm:$0x3] %vm33, %v32
    %s35 = scalar_lea.vmem %s0, 6
    %s36 = smov 3
    %v37 = vld [vmem:[%s35] ss:$16 sm:%s36]
    %38 = vrot.lane.b32.xlu0 %v37, 84
    %v39 = vpop.permute.xlu0 %38
    %vm40 = vcmask 802464
    %41 = vst.msk [vmem:[#allocation0] ss:$16 sm:$0x3] %vm40, %v39
    %s42 = scalar_lea.vmem %s0, 5
    %s43 = smov 3
    %v44 = vld [vmem:[%s42] ss:$16 sm:%s43]
    %45 = vrot.lane.b32.xlu0 %v44, 70
    %v46 = vpop.permute.xlu0 %45
    %vm47 = vcmask 687664
    %48 = vst.msk [vmem:[#allocation0] ss:$16 sm:$0x3] %vm47, %v46
    %s49 = scalar_lea.vmem %s0, 4
    %s50 = smov 3
    %v51 = vld [vmem:[%s49] ss:$16 sm:%s50]
    %52 = vrot.lane.b32.xlu0 %v51, 56
    %v53 = vpop.permute.xlu0 %52
    %vm54 = vcmask 572864
    %55 = vst.msk [vmem:[#allocation0] ss:$16 sm:$0x3] %vm54, %v53
    %s56 = scalar_lea.vmem %s0, 13
    %s57 = smov 3
    %v58 = vld [vmem:[%s56] ss:$16 sm:%s57]
    %59 = vrot.lane.b32.xlu0 %v58, 54
    %v60 = vpop.permute.xlu0 %59
    %vm61 = vcmask 556464
    %s62 = scalar_lea.vmem [#allocation0], 8
    %63 = vst.msk [vmem:[%s62] ss:$16 sm:$0x3] %vm61, %v60
    %s64 = scalar_lea.vmem %s0, 3
    %s65 = smov 3
    %v66 = vld [vmem:[%s64] ss:$16 sm:%s65]
    %67 = vrot.lane.b32.xlu0 %v66, 42
    %v68 = vpop.permute.xlu0 %67
    %vm69 = vcmask 458064
    %70 = vst.msk [vmem:[#allocation0] ss:$16 sm:$0x3] %vm69, %v68
    %s71 = scalar_lea.vmem %s0, 12
    %s72 = smov 3
    %v73 = vld [vmem:[%s71] ss:$16 sm:%s72]
    %74 = vrot.lane.b32.xlu0 %v73, 40
    %v75 = vpop.permute.xlu0 %74
    %vm76 = vcmask 441664
    %s77 = scalar_lea.vmem [#allocation0], 8
    %78 = vst.msk [vmem:[%s77] ss:$16 sm:$0x3] %vm76, %v75
    %s79 = scalar_lea.vmem %s0, 2
    %s80 = smov 3
    %v81 = vld [vmem:[%s79] ss:$16 sm:%s80]
    %82 = vrot.lane.b32.xlu0 %v81, 28
    %v83 = vpop.permute.xlu0 %82
    %vm84 = vcmask 343264
    %85 = vst.msk [vmem:[#allocation0] ss:$16 sm:$0x3] %vm84, %v83
    %s86 = scalar_lea.vmem %s0, 11
    %s87 = smov 3
    %v88 = vld [vmem:[%s86] ss:$16 sm:%s87]
    %89 = vrot.lane.b32.xlu0 %v88, 26
    %v90 = vpop.permute.xlu0 %89
    %vm91 = vcmask 326864
    %s92 = scalar_lea.vmem [#allocation0], 8
    %93 = vst.msk [vmem:[%s92] ss:$16 sm:$0x3] %vm91, %v90
    %s94 = scalar_lea.vmem %s0, 1
    %s95 = smov 3
    %v96 = vld [vmem:[%s94] ss:$16 sm:%s95]
    %97 = vrot.lane.b32.xlu0 %v96, 14
    %v98 = vpop.permute.xlu0 %97
    %vm99 = vcmask 228464
    %100 = vst.msk [vmem:[#allocation0] ss:$16 sm:$0x3] %vm99, %v98
    %s101 = scalar_lea.vmem %s0, 10
    %s102 = smov 3
    %v103 = vld [vmem:[%s101] ss:$16 sm:%s102]
    %104 = vrot.lane.b32.xlu0 %v103, 12
    %v105 = vpop.permute.xlu0 %104
    %vm106 = vcmask 212064
    %s107 = scalar_lea.vmem [#allocation0], 8
    %108 = vst.msk [vmem:[%s107] ss:$16 sm:$0x3] %vm106, %v105
    %s110 = sshllo.u32 0, 1
    %v112 = vld [vmem:[#allocation0] sm:%s110]
    %s113 = sshllo.u32 0, 1
    %114 = vst [vmem:[%s1] sm:%s113] %v112
    %s115 = scalar_lea.vmem [#allocation0], 8
    %v116 = vld [vmem:[%s115] sm:%s110]
    %s117 = sshllo.u32 0, 1
    %s118 = scalar_lea.vmem %s1, 1
    %119 = vst [vmem:[%s118] sm:%s117] %v116
    %s120 = scalar_lea.vmem [#allocation0], 16
    %v121 = vld [vmem:[%s120] sm:%s110]
    %s122 = sshllo.u32 0, 1
    %s123 = smul.addr 1, 2
    %s124 = scalar_lea.vmem %s1, %s123
    %125 = vst [vmem:[%s124] sm:%s122] %v121
    %s126 = scalar_lea.vmem [#allocation0], 24
    %v127 = vld [vmem:[%s126] sm:%s110]
    %s128 = sshllo.u32 0, 1
    %s129 = smul.addr 1, 3
    %s130 = scalar_lea.vmem %s1, %s129
    %131 = vst [vmem:[%s130] sm:%s128] %v127

// kernel: mlp_value_forward.1
$region0: #{mlp_value_forward.1}
  #allocation0 [shape = 'u32[]', space=smem, size = 0x4, offset = 0x4, fixed_abs, tag = 'smem constant byte address 0x4 - core index']
  #allocation1 [shape = 'u32[144,128]{1,0:T(1,128)}', space=vmem, size = 0x12000, scoped, tag = 'internal scratch']
  #allocation2 [shape = 'f32[1,1]{1,0:T(1,128)S(1)}', space=vmem, size = 0x200, scoped, tag = 'scoped memory for mlp_value_forward.1']
  %s0 = inlined_call_operand.vmem [shape: f32[2,36,196], index: 0, kind: input, shape index: {}]
  %s1 = inlined_call_operand.vmem [shape: f32[8,36], index: 1, kind: input, shape index: {}]
  %s2 = inlined_call_operand.vmem [shape: f32[8,1], index: 2, kind: input, shape index: {}]
  %s3 = inlined_call_operand.vmem [shape: f32[8,196,64], index: 3, kind: input, shape index: {}]
  %s4 = inlined_call_operand.vmem [shape: f32[1,64], index: 4, kind: input, shape index: {}]
  %s5 = inlined_call_operand.vmem [shape: f32[64,32], index: 5, kind: input, shape index: {}]
  %s6 = inlined_call_operand.vmem [shape: f32[1,32], index: 6, kind: input, shape index: {}]
  %s7 = inlined_call_operand.vmem [shape: f32[1,32], index: 7, kind: input, shape index: {}]
  %s8 = inlined_call_operand.<no memory space> [shape: f32[1,1], index: 8, kind: input, shape index: {}]
  %s9 = inlined_call_operand.vmem [shape: f32[2,1], index: 9, kind: output, shape index: {}]
  %s10 = sld [smem:[#allocation0]]
  $region46: #{mlp_value_forward.1} parent=0
    _
  %s12 = ssub.s32 1, %s10
  %s13 = scalar_select 0, %s12, %s10
  %v14 = vstv %s8
  %15 = vst [vmem:[#allocation2] sm:$0x1] %v14
  // Predicated region
  $region2: #{mlp_value_forward.1} parent=0 // pred_check
    _
  $region3: #{mlp_value_forward.1} parent=0 // pred_check_branch
    %17 = sbr.rel (0) target = $region5
  $region4: #{mlp_value_forward.1} parent=0 // pred_region
    _
  $region5: #{mlp_value_forward.1} parent=0 // pred_fallthru
    _
  // Predicated region
  $region6: #{mlp_value_forward.1} parent=0 // pred_check
    _
  $region7: #{mlp_value_forward.1} parent=0 // pred_check_branch
    %19 = sbr.rel (0) target = $region9
  $region8: #{mlp_value_forward.1} parent=0 // pred_region
    _
  $region9: #{mlp_value_forward.1} parent=0 // pred_fallthru
    _
  // Predicated region
  $region10: #{mlp_value_forward.1} parent=0 // pred_check
    _
  $region11: #{mlp_value_forward.1} parent=0 // pred_check_branch
    %21 = sbr.rel (0) target = $region13
  $region12: #{mlp_value_forward.1} parent=0 // pred_region
    _
  $region13: #{mlp_value_forward.1} parent=0 // pred_fallthru
    _
  // Predicated region
  $region14: #{mlp_value_forward.1} parent=0 // pred_check
    _
  $region15: #{mlp_value_forward.1} parent=0 // pred_check_branch
    %23 = sbr.rel (0) target = $region17
  $region16: #{mlp_value_forward.1} parent=0 // pred_region
    _
  $region17: #{mlp_value_forward.1} parent=0 // pred_fallthru
    _
  // Predicated region
  $region18: #{mlp_value_forward.1} parent=0 // pred_check
    _
  $region19: #{mlp_value_forward.1} parent=0 // pred_check_branch
    %25 = sbr.rel (0) target = $region21
  $region20: #{mlp_value_forward.1} parent=0 // pred_region
    _
  $region21: #{mlp_value_forward.1} parent=0 // pred_fallthru
    _
  // Predicated region
  $region22: #{mlp_value_forward.1} parent=0 // pred_check
    _
  $region23: #{mlp_value_forward.1} parent=0 // pred_check_branch
    %27 = sbr.rel (0) target = $region25
  $region24: #{mlp_value_forward.1} parent=0 // pred_region
    _
  $region25: #{mlp_value_forward.1} parent=0 // pred_fallthru
    _
  // Predicated region
  $region26: #{mlp_value_forward.1} parent=0 // pred_check
    _
  $region27: #{mlp_value_forward.1} parent=0 // pred_check_branch
    %29 = sbr.rel (0) target = $region29
  $region28: #{mlp_value_forward.1} parent=0 // pred_region
    _
  $region29: #{mlp_value_forward.1} parent=0 // pred_fallthru
    _
  // Predicated region
  $region30: #{mlp_value_forward.1} parent=0 // pred_check
    _
  $region31: #{mlp_value_forward.1} parent=0 // pred_check_branch
    %31 = sbr.rel (0) target = $region33
  $region32: #{mlp_value_forward.1} parent=0 // pred_region
    _
  $region33: #{mlp_value_forward.1} parent=0 // pred_fallthru
    _
  // Predicated region
  $region34: #{mlp_value_forward.1} parent=0 // pred_check
    _
  $region35: #{mlp_value_forward.1} parent=0 // pred_check_branch
    %33 = sbr.rel (0) target = $region37
  $region36: #{mlp_value_forward.1} parent=0 // pred_region
    _
  $region37: #{mlp_value_forward.1} parent=0 // pred_fallthru
    _
  %v34 = vld [vmem:[%s1] sm:$0xff]
  %v35 = vld [vmem:[%s2] sm:$0xff]
  %v36 = vld [vmem:[%s0] sm:$0xff]
  %v37 = vld [vmem:[%s0 + $0x8] sm:$0xff]
  %v38 = vld [vmem:[%s0 + $0x10] sm:$0xff]
  %v39 = vld [vmem:[%s0 + $0x18] sm:$0xff]
  %v40 = vld [vmem:[%s0 + $0x20] sm:$0xff]
  %v41 = vld [vmem:[%s0 + $0x28] sm:$0xff]
  %v42 = vld [vmem:[%s0 + $0x30] sm:$0xff]
  %v43 = vld [vmem:[%s0 + $0x38] sm:$0xff]
  %v44 = vld [vmem:[%s0 + $0x40] sm:$0xf]
  %v45 = vld [vmem:[%s0 + $0x48] sm:$0xf]
  %47 = vset.pattern.permute.xlu0 0
  %48 = vperm.xlu0 %47, %v35
  %v49 = vpop.permute.xlu0 %48
  %vm51 = vcmask 293888
  %v53 = vsel %vm51, %v34, 0
  %vm55 = vcmask 1043456
  %v57 = vsel %vm55, %v44, 0
  %v60 = vsel %vm55, %v45, 0
  %62 = vmatprep.subr.mxu0 %v37
  %63 = vmatpush1.msra.mxu0 %v36
  %64 = vmatprep.subr.mxu0 %v39
  %65 = vmatpush1.msra.mxu0 %v38
  %66 = vmatprep.subr.mxu0 %v41
  %67 = vmatpush1.msra.mxu0 %v40
  %68 = vmatprep.subr.mxu0 %v43
  %69 = vmatpush1.msra.mxu0 %v42
  %70 = vmatprep.subr.mxu0 %v60
  %71 = vmatpush1.msra.mxu0 %v57
  %72 = vmatprep.subr.mxu0 0.0
  %73 = vmatpush1.msra.mxu0 0.0
  %74 = vmatprep.subr.mxu0 0.0
  %75 = vmatpush1.msra.mxu0 0.0
  %76 = vmatprep.subr.mxu0 0.0
  %77 = vmatpush1.msra.mxu0 0.0
  %78 = vmatprep.subr.mxu0 0.0
  %79 = vmatpush1.msra.mxu0 0.0
  %80 = vmatprep.subr.mxu0 0.0
  %81 = vmatpush1.msra.mxu0 0.0
  %82 = vmatprep.subr.mxu0 0.0
  %83 = vmatpush1.msra.mxu0 0.0
  %84 = vmatprep.subr.mxu0 0.0
  %85 = vmatpush1.msra.mxu0 0.0
  %86 = vmatprep.subr.mxu0 0.0
  %87 = vmatpush1.msra.mxu0 0.0
  %88 = vmatprep.subr.mxu0 0.0
  %89 = vmatpush1.msra.mxu0 0.0
  %90 = vmatprep.subr.mxu0 0.0
  %91 = vmatpush1.msra.mxu0 0.0
  %92 = vmatprep.subr.mxu0 0.0
  %93 = vmatpush1.msra.mxu0 0.0
  %94 = vmatprep.subr.mxu0 0.0
  %95 = vmatpush1.msra.mxu0 0.0
  %96 = vmatprep.subr.mxu0 0.0
  %97 = vmatpush1.msra.mxu0 0.0
  %98 = vmatprep.subr.mxu0 0.0
  %99 = vmatpush1.msra.mxu0 0.0
  %100 = vmatprep.subr.mxu0 0.0
  %101 = vmatpush1.msra.mxu0 0.0
  %102 = vmatprep.subr.mxu0 0.0
  %103 = vmatpush1.msra.mxu0 0.0
  %104 = vmatprep.subr.mxu0 0.0
  %105 = vmatpush1.msra.mxu0 0.0
  %106 = vmatprep.subr.mxu0 0.0
  %107 = vmatpush1.msra.mxu0 0.0
  %108 = vmatprep.subr.mxu0 0.0
  %109 = vmatpush1.msra.mxu0 0.0
  %110 = vmatprep.subr.mxu0 0.0
  %111 = vmatpush1.msra.mxu0 0.0
  %112 = vmatprep.subr.mxu0 0.0
  %113 = vmatpush1.msra.mxu0 0.0
  %114 = vmatprep.subr.mxu0 0.0
  %115 = vmatpush1.msra.mxu0 0.0
  %116 = vmatprep.subr.mxu0 0.0
  %117 = vmatpush1.msra.mxu0 0.0
  %118 = vmatprep.subr.mxu0 0.0
  %119 = vmatpush1.msra.mxu0 0.0
  %120 = vmatprep.subr.mxu0 0.0
  %121 = vmatpush1.msra.mxu0 0.0
  %122 = vmatprep.subr.mxu0 0.0
  %123 = vmatpush1.msra.mxu0 0.0
  %124 = vmatprep.subr.mxu0 0.0
  %125 = vmatpush1.msra.mxu0 0.0
  %126 = vmatprep.mubr.f32.mxu0 0.0
  %127 = vmatmul.mubr.f32.gmra.mrb[0].mxu0 %v53
  %v128 = vpop.f32.mrb[0].mxu0
  %v129 = vadd.f32 %v49, %v128
  %v130 = vpop.f32.mrb[0].mxu0
  %v131 = vadd.f32 %v49, %v130
  %132 = vdwg.mxu0
  %v133 = vtanh.pop %v129
  %v134 = vtanh.pop %v131
  %s135 = scalar_lea.vmem %s0, 80
  %v136 = vld [vmem:[%s135] sm:$0xff]
  %v137 = vld [vmem:[%s135 + $0x8] sm:$0xff]
  %v138 = vld [vmem:[%s135 + $0x10] sm:$0xff]
  %v139 = vld [vmem:[%s135 + $0x18] sm:$0xff]
  %v140 = vld [vmem:[%s135 + $0x20] sm:$0xff]
  %v141 = vld [vmem:[%s135 + $0x28] sm:$0xff]
  %v142 = vld [vmem:[%s135 + $0x30] sm:$0xff]
  %v143 = vld [vmem:[%s135 + $0x38] sm:$0xff]
  %v144 = vld [vmem:[%s135 + $0x40] sm:$0xf]
  %v145 = vld [vmem:[%s135 + $0x48] sm:$0xf]
  %v147 = vsel %vm55, %v144, 0
  %v150 = vsel %vm55, %v145, 0
  %152 = vmatprep.subr.mxu0 %v137
  %153 = vmatpush1.msra.mxu0 %v136
  %154 = vmatprep.subr.mxu0 %v139
  %155 = vmatpush1.msra.mxu0 %v138
  %156 = vmatprep.subr.mxu0 %v141
  %157 = vmatpush1.msra.mxu0 %v140
  %158 = vmatprep.subr.mxu0 %v143
  %159 = vmatpush1.msra.mxu0 %v142
  %160 = vmatprep.subr.mxu0 %v150
  %161 = vmatpush1.msra.mxu0 %v147
  %162 = vmatprep.subr.mxu0 0.0
  %163 = vmatpush1.msra.mxu0 0.0
  %164 = vmatprep.subr.mxu0 0.0
  %165 = vmatpush1.msra.mxu0 0.0
  %166 = vmatprep.subr.mxu0 0.0
  %167 = vmatpush1.msra.mxu0 0.0
  %168 = vmatprep.subr.mxu0 0.0
  %169 = vmatpush1.msra.mxu0 0.0
  %170 = vmatprep.subr.mxu0 0.0
  %171 = vmatpush1.msra.mxu0 0.0
  %172 = vmatprep.subr.mxu0 0.0
  %173 = vmatpush1.msra.mxu0 0.0
  %174 = vmatprep.subr.mxu0 0.0
  %175 = vmatpush1.msra.mxu0 0.0
  %176 = vmatprep.subr.mxu0 0.0
  %177 = vmatpush1.msra.mxu0 0.0
  %178 = vmatprep.subr.mxu0 0.0
  %179 = vmatpush1.msra.mxu0 0.0
  %180 = vmatprep.subr.mxu0 0.0
  %181 = vmatpush1.msra.mxu0 0.0
  %182 = vmatprep.subr.mxu0 0.0
  %183 = vmatpush1.msra.mxu0 0.0
  %184 = vmatprep.subr.mxu0 0.0
  %185 = vmatpush1.msra.mxu0 0.0
  %186 = vmatprep.subr.mxu0 0.0
  %187 = vmatpush1.msra.mxu0 0.0
  %188 = vmatprep.subr.mxu0 0.0
  %189 = vmatpush1.msra.mxu0 0.0
  %190 = vmatprep.subr.mxu0 0.0
  %191 = vmatpush1.msra.mxu0 0.0
  %192 = vmatprep.subr.mxu0 0.0
  %193 = vmatpush1.msra.mxu0 0.0
  %194 = vmatprep.subr.mxu0 0.0
  %195 = vmatpush1.msra.mxu0 0.0
  %196 = vmatprep.subr.mxu0 0.0
  %197 = vmatpush1.msra.mxu0 0.0
  %198 = vmatprep.subr.mxu0 0.0
  %199 = vmatpush1.msra.mxu0 0.0
  %200 = vmatprep.subr.mxu0 0.0
  %201 = vmatpush1.msra.mxu0 0.0
  %202 = vmatprep.subr.mxu0 0.0
  %203 = vmatpush1.msra.mxu0 0.0
  %204 = vmatprep.subr.mxu0 0.0
  %205 = vmatpush1.msra.mxu0 0.0
  %206 = vmatprep.subr.mxu0 0.0
  %207 = vmatpush1.msra.mxu0 0.0
  %208 = vmatprep.subr.mxu0 0.0
  %209 = vmatpush1.msra.mxu0 0.0
  %210 = vmatprep.subr.mxu0 0.0
  %211 = vmatpush1.msra.mxu0 0.0
  %212 = vmatprep.subr.mxu0 0.0
  %213 = vmatpush1.msra.mxu0 0.0
  %214 = vmatprep.subr.mxu0 0.0
  %215 = vmatpush1.msra.mxu0 0.0
  %216 = vmatprep.mubr.f32.mxu0 0.0
  %217 = vmatmul.mubr.f32.gmra.mrb[0].mxu0 %v53
  %v218 = vpop.f32.mrb[0].mxu0
  %v219 = vadd.f32 %v49, %v218
  %v220 = vpop.f32.mrb[0].mxu0
  %v221 = vadd.f32 %v49, %v220
  %222 = vdwg.mxu0
  %v223 = vtanh.pop %v219
  %v224 = vtanh.pop %v221
  %v225 = vld [vmem:[%s4] sm:$0x1]
  %v228 = vrot.slane %v223, 7
  %v229 = vrot.slane %v224, 7
  %vm232 = vcmask 1040384
  %v233 = vsel %vm232, %v133, %v228
  %v234 = vsel %vm232, %v134, %v229
  %v235 = vld [vmem:[%s3] sm:$0xff]
  %v236 = vld [vmem:[%s3 + $0x8] sm:$0xff]
  %v237 = vld [vmem:[%s3 + $0x10] sm:$0xff]
  %v238 = vld [vmem:[%s3 + $0x18] sm:$0xff]
  %v239 = vld [vmem:[%s3 + $0x20] sm:$0xff]
  %v240 = vld [vmem:[%s3 + $0x28] sm:$0xff]
  %v241 = vld [vmem:[%s3 + $0x30] sm:$0xff]
  %v242 = vld [vmem:[%s3 + $0x38] sm:$0xff]
  %v243 = vld [vmem:[%s3 + $0x40] sm:$0xff]
  %v244 = vld [vmem:[%s3 + $0x48] sm:$0xff]
  %v245 = vld [vmem:[%s3 + $0x50] sm:$0xff]
  %v246 = vld [vmem:[%s3 + $0x58] sm:$0xff]
  %v247 = vld [vmem:[%s3 + $0x60] sm:$0xff]
  %v248 = vld [vmem:[%s3 + $0x68] sm:$0xff]
  %v249 = vld [vmem:[%s3 + $0x70] sm:$0xff]
  %v250 = vld [vmem:[%s3 + $0x78] sm:$0xff]
  %v251 = vld [vmem:[%s3 + $0x80] sm:$0xff]
  %v252 = vld [vmem:[%s3 + $0x88] sm:$0xff]
  %v253 = vld [vmem:[%s3 + $0x90] sm:$0xff]
  %v254 = vld [vmem:[%s3 + $0x98] sm:$0xff]
  %v255 = vld [vmem:[%s3 + $0xa0] sm:$0xff]
  %v256 = vld [vmem:[%s3 + $0xa8] sm:$0xff]
  %v257 = vld [vmem:[%s3 + $0xb0] sm:$0xff]
  %v258 = vld [vmem:[%s3 + $0xb8] sm:$0xff]
  %v259 = vld [vmem:[%s3 + $0xc0] sm:$0xf]
  %vm260 = vcmask 556032
  %v262 = vsel %vm260, %v234, 0
  %v265 = vsel %vm55, %v259, 0
  %267 = vmatprep.subr.mxu0 0.0
  %268 = vmatpush1.msra.mxu0 %v235
  %269 = vmatprep.subr.mxu0 0.0
  %270 = vmatpush1.msra.mxu0 %v236
  %271 = vmatprep.subr.mxu0 0.0
  %272 = vmatpush1.msra.mxu0 %v237
  %273 = vmatprep.subr.mxu0 0.0
  %274 = vmatpush1.msra.mxu0 %v238
  %275 = vmatprep.subr.mxu0 0.0
  %276 = vmatpush1.msra.mxu0 %v239
  %277 = vmatprep.subr.mxu0 0.0
  %278 = vmatpush1.msra.mxu0 %v240
  %279 = vmatprep.subr.mxu0 0.0
  %280 = vmatpush1.msra.mxu0 %v241
  %281 = vmatprep.subr.mxu0 0.0
  %282 = vmatpush1.msra.mxu0 %v242
  %283 = vmatprep.subr.mxu0 0.0
  %284 = vmatpush1.msra.mxu0 %v243
  %285 = vmatprep.subr.mxu0 0.0
  %286 = vmatpush1.msra.mxu0 %v244
  %287 = vmatprep.subr.mxu0 0.0
  %288 = vmatpush1.msra.mxu0 %v245
  %289 = vmatprep.subr.mxu0 0.0
  %290 = vmatpush1.msra.mxu0 %v246
  %291 = vmatprep.subr.mxu0 0.0
  %292 = vmatpush1.msra.mxu0 %v247
  %293 = vmatprep.subr.mxu0 0.0
  %294 = vmatpush1.msra.mxu0 %v248
  %295 = vmatprep.subr.mxu0 0.0
  %296 = vmatpush1.msra.mxu0 %v249
  %297 = vmatprep.subr.mxu0 0.0
  %298 = vmatpush1.msra.mxu0 %v250
  %299 = vmatprep.subr.mxu0 0.0
  %300 = vmatpush1.msra.mxu0 %v251
  %301 = vmatprep.subr.mxu0 0.0
  %302 = vmatpush1.msra.mxu0 %v252
  %303 = vmatprep.subr.mxu0 0.0
  %304 = vmatpush1.msra.mxu0 %v253
  %305 = vmatprep.subr.mxu0 0.0
  %306 = vmatpush1.msra.mxu0 %v254
  %307 = vmatprep.subr.mxu0 0.0
  %308 = vmatpush1.msra.mxu0 %v255
  %309 = vmatprep.subr.mxu0 0.0
  %310 = vmatpush1.msra.mxu0 %v256
  %311 = vmatprep.subr.mxu0 0.0
  %312 = vmatpush1.msra.mxu0 %v257
  %313 = vmatprep.subr.mxu0 0.0
  %314 = vmatpush1.msra.mxu0 %v258
  %315 = vmatprep.subr.mxu0 0.0
  %316 = vmatpush1.msra.mxu0 %v265
  %317 = vmatprep.subr.mxu0 0.0
  %318 = vmatpush1.msra.mxu0 0.0
  %319 = vmatprep.subr.mxu0 0.0
  %320 = vmatpush1.msra.mxu0 0.0
  %321 = vmatprep.subr.mxu0 0.0
  %322 = vmatpush1.msra.mxu0 0.0
  %323 = vmatprep.subr.mxu0 0.0
  %324 = vmatpush1.msra.mxu0 0.0
  %325 = vmatprep.subr.mxu0 0.0
  %326 = vmatpush1.msra.mxu0 0.0
  %327 = vmatprep.subr.mxu0 0.0
  %328 = vmatpush1.msra.mxu0 0.0
  %329 = vmatprep.subr.mxu0 0.0
  %330 = vmatpush1.msra.mxu0 0.0
  %331 = vmatprep.mubr.f32.mxu0 %v262
  %332 = vmatmul.mubr.f32.gmra.mrb[0].mxu0 %v233
  %v333 = vpop.f32.mrb[0].mxu0
  %v334 = vadd.f32 0.0, %v333
  %v335 = vpop.f32.mrb[0].mxu0
  %336 = vdwg.mxu0
  %v338 = vlaneseq
  %v339 = vshrl.u32 %v338, 7
  %v340 = vsub.s32 0, %v339
  %v341 = vrot.slane %v225, %v340
  %v343 = vadd.f32 %v341, %v334
  %v346 = vrot.slane %v133, 1
  %v347 = vrot.slane %v134, 1
  %v350 = vsel %vm232, %v346, %v223
  %v351 = vsel %vm232, %v347, %v224
  %s352 = scalar_lea.vmem %s3, 200
  %v353 = vld [vmem:[%s352] sm:$0xff]
  %v354 = vld [vmem:[%s352 + $0x8] sm:$0xff]
  %v355 = vld [vmem:[%s352 + $0x10] sm:$0xff]
  %v356 = vld [vmem:[%s352 + $0x18] sm:$0xff]
  %v357 = vld [vmem:[%s352 + $0x20] sm:$0xff]
  %v358 = vld [vmem:[%s352 + $0x28] sm:$0xff]
  %v359 = vld [vmem:[%s352 + $0x30] sm:$0xff]
  %v360 = vld [vmem:[%s352 + $0x38] sm:$0xff]
  %v361 = vld [vmem:[%s352 + $0x40] sm:$0xff]
  %v362 = vld [vmem:[%s352 + $0x48] sm:$0xff]
  %v363 = vld [vmem:[%s352 + $0x50] sm:$0xff]
  %v364 = vld [vmem:[%s352 + $0x58] sm:$0xff]
  %v365 = vld [vmem:[%s352 + $0x60] sm:$0xff]
  %v366 = vld [vmem:[%s352 + $0x68] sm:$0xff]
  %v367 = vld [vmem:[%s352 + $0x70] sm:$0xff]
  %v368 = vld [vmem:[%s352 + $0x78] sm:$0xff]
  %v369 = vld [vmem:[%s352 + $0x80] sm:$0xff]
  %v370 = vld [vmem:[%s352 + $0x88] sm:$0xff]
  %v371 = vld [vmem:[%s352 + $0x90] sm:$0xff]
  %v372 = vld [vmem:[%s352 + $0x98] sm:$0xff]
  %v373 = vld [vmem:[%s352 + $0xa0] sm:$0xff]
  %v374 = vld [vmem:[%s352 + $0xa8] sm:$0xff]
  %v375 = vld [vmem:[%s352 + $0xb0] sm:$0xff]
  %v376 = vld [vmem:[%s352 + $0xb8] sm:$0xff]
  %v377 = vld [vmem:[%s352 + $0xc0] sm:$0xf]
  %v379 = vsel %vm260, %v351, 0
  %v382 = vsel %vm55, %v377, 0
  %384 = vmatprep.subr.mxu0 0.0
  %385 = vmatpush1.msra.mxu0 %v353
  %386 = vmatprep.subr.mxu0 0.0
  %387 = vmatpush1.msra.mxu0 %v354
  %388 = vmatprep.subr.mxu0 0.0
  %389 = vmatpush1.msra.mxu0 %v355
  %390 = vmatprep.subr.mxu0 0.0
  %391 = vmatpush1.msra.mxu0 %v356
  %392 = vmatprep.subr.mxu0 0.0
  %393 = vmatpush1.msra.mxu0 %v357
  %394 = vmatprep.subr.mxu0 0.0
  %395 = vmatpush1.msra.mxu0 %v358
  %396 = vmatprep.subr.mxu0 0.0
  %397 = vmatpush1.msra.mxu0 %v359
  %398 = vmatprep.subr.mxu0 0.0
  %399 = vmatpush1.msra.mxu0 %v360
  %400 = vmatprep.subr.mxu0 0.0
  %401 = vmatpush1.msra.mxu0 %v361
  %402 = vmatprep.subr.mxu0 0.0
  %403 = vmatpush1.msra.mxu0 %v362
  %404 = vmatprep.subr.mxu0 0.0
  %405 = vmatpush1.msra.mxu0 %v363
  %406 = vmatprep.subr.mxu0 0.0
  %407 = vmatpush1.msra.mxu0 %v364
  %408 = vmatprep.subr.mxu0 0.0
  %409 = vmatpush1.msra.mxu0 %v365
  %410 = vmatprep.subr.mxu0 0.0
  %411 = vmatpush1.msra.mxu0 %v366
  %412 = vmatprep.subr.mxu0 0.0
  %413 = vmatpush1.msra.mxu0 %v367
  %414 = vmatprep.subr.mxu0 0.0
  %415 = vmatpush1.msra.mxu0 %v368
  %416 = vmatprep.subr.mxu0 0.0
  %417 = vmatpush1.msra.mxu0 %v369
  %418 = vmatprep.subr.mxu0 0.0
  %419 = vmatpush1.msra.mxu0 %v370
  %420 = vmatprep.subr.mxu0 0.0
  %421 = vmatpush1.msra.mxu0 %v371
  %422 = vmatprep.subr.mxu0 0.0
  %423 = vmatpush1.msra.mxu0 %v372
  %424 = vmatprep.subr.mxu0 0.0
  %425 = vmatpush1.msra.mxu0 %v373
  %426 = vmatprep.subr.mxu0 0.0
  %427 = vmatpush1.msra.mxu0 %v374
  %428 = vmatprep.subr.mxu0 0.0
  %429 = vmatpush1.msra.mxu0 %v375
  %430 = vmatprep.subr.mxu0 0.0
  %431 = vmatpush1.msra.mxu0 %v376
  %432 = vmatprep.subr.mxu0 0.0
  %433 = vmatpush1.msra.mxu0 %v382
  %434 = vmatprep.subr.mxu0 0.0
  %435 = vmatpush1.msra.mxu0 0.0
  %436 = vmatprep.subr.mxu0 0.0
  %437 = vmatpush1.msra.mxu0 0.0
  %438 = vmatprep.subr.mxu0 0.0
  %439 = vmatpush1.msra.mxu0 0.0
  %440 = vmatprep.subr.mxu0 0.0
  %441 = vmatpush1.msra.mxu0 0.0
  %442 = vmatprep.subr.mxu0 0.0
  %443 = vmatpush1.msra.mxu0 0.0
  %444 = vmatprep.subr.mxu0 0.0
  %445 = vmatpush1.msra.mxu0 0.0
  %446 = vmatprep.subr.mxu0 0.0
  %447 = vmatpush1.msra.mxu0 0.0
  %448 = vmatprep.mubr.f32.mxu0 %v379
  %449 = vmatmul.mubr.f32.gmra.mrb[0].mxu0 %v350
  %v450 = vpop.f32.mrb[0].mxu0
  %v451 = vadd.f32 0.0, %v450
  %v452 = vpop.f32.mrb[0].mxu0
  %453 = vdwg.mxu0
  %v454 = vadd.f32 %v343, %v451
  %v455 = vrot.slane %v133, 2
  %v456 = vrot.slane %v134, 2
  %v459 = vrot.slane %v223, 1
  %v460 = vrot.slane %v224, 1
  %v463 = vsel %vm232, %v455, %v459
  %v464 = vsel %vm232, %v456, %v460
  %s465 = scalar_lea.vmem %s3, 400
  %v466 = vld [vmem:[%s465] sm:$0xff]
  %v467 = vld [vmem:[%s465 + $0x8] sm:$0xff]
  %v468 = vld [vmem:[%s465 + $0x10] sm:$0xff]
  %v469 = vld [vmem:[%s465 + $0x18] sm:$0xff]
  %v470 = vld [vmem:[%s465 + $0x20] sm:$0xff]
  %v471 = vld [vmem:[%s465 + $0x28] sm:$0xff]
  %v472 = vld [vmem:[%s465 + $0x30] sm:$0xff]
  %v473 = vld [vmem:[%s465 + $0x38] sm:$0xff]
  %v474 = vld [vmem:[%s465 + $0x40] sm:$0xff]
  %v475 = vld [vmem:[%s465 + $0x48] sm:$0xff]
  %v476 = vld [vmem:[%s465 + $0x50] sm:$0xff]
  %v477 = vld [vmem:[%s465 + $0x58] sm:$0xff]
  %v478 = vld [vmem:[%s465 + $0x60] sm:$0xff]
  %v479 = vld [vmem:[%s465 + $0x68] sm:$0xff]
  %v480 = vld [vmem:[%s465 + $0x70] sm:$0xff]
  %v481 = vld [vmem:[%s465 + $0x78] sm:$0xff]
  %v482 = vld [vmem:[%s465 + $0x80] sm:$0xff]
  %v483 = vld [vmem:[%s465 + $0x88] sm:$0xff]
  %v484 = vld [vmem:[%s465 + $0x90] sm:$0xff]
  %v485 = vld [vmem:[%s465 + $0x98] sm:$0xff]
  %v486 = vld [vmem:[%s465 + $0xa0] sm:$0xff]
  %v487 = vld [vmem:[%s465 + $0xa8] sm:$0xff]
  %v488 = vld [vmem:[%s465 + $0xb0] sm:$0xff]
  %v489 = vld [vmem:[%s465 + $0xb8] sm:$0xff]
  %v490 = vld [vmem:[%s465 + $0xc0] sm:$0xf]
  %v492 = vsel %vm260, %v464, 0
  %v495 = vsel %vm55, %v490, 0
  %497 = vmatprep.subr.mxu0 0.0
  %498 = vmatpush1.msra.mxu0 %v466
  %499 = vmatprep.subr.mxu0 0.0
  %500 = vmatpush1.msra.mxu0 %v467
  %501 = vmatprep.subr.mxu0 0.0
  %502 = vmatpush1.msra.mxu0 %v468
  %503 = vmatprep.subr.mxu0 0.0
  %504 = vmatpush1.msra.mxu0 %v469
  %505 = vmatprep.subr.mxu0 0.0
  %506 = vmatpush1.msra.mxu0 %v470
  %507 = vmatprep.subr.mxu0 0.0
  %508 = vmatpush1.msra.mxu0 %v471
  %509 = vmatprep.subr.mxu0 0.0
  %510 = vmatpush1.msra.mxu0 %v472
  %511 = vmatprep.subr.mxu0 0.0
  %512 = vmatpush1.msra.mxu0 %v473
  %513 = vmatprep.subr.mxu0 0.0
  %514 = vmatpush1.msra.mxu0 %v474
  %515 = vmatprep.subr.mxu0 0.0
  %516 = vmatpush1.msra.mxu0 %v475
  %517 = vmatprep.subr.mxu0 0.0
  %518 = vmatpush1.msra.mxu0 %v476
  %519 = vmatprep.subr.mxu0 0.0
  %520 = vmatpush1.msra.mxu0 %v477
  %521 = vmatprep.subr.mxu0 0.0
  %522 = vmatpush1.msra.mxu0 %v478
  %523 = vmatprep.subr.mxu0 0.0
  %524 = vmatpush1.msra.mxu0 %v479
  %525 = vmatprep.subr.mxu0 0.0
  %526 = vmatpush1.msra.mxu0 %v480
  %527 = vmatprep.subr.mxu0 0.0
  %528 = vmatpush1.msra.mxu0 %v481
  %529 = vmatprep.subr.mxu0 0.0
  %530 = vmatpush1.msra.mxu0 %v482
  %531 = vmatprep.subr.mxu0 0.0
  %532 = vmatpush1.msra.mxu0 %v483
  %533 = vmatprep.subr.mxu0 0.0
  %534 = vmatpush1.msra.mxu0 %v484
  %535 = vmatprep.subr.mxu0 0.0
  %536 = vmatpush1.msra.mxu0 %v485
  %537 = vmatprep.subr.mxu0 0.0
  %538 = vmatpush1.msra.mxu0 %v486
  %539 = vmatprep.subr.mxu0 0.0
  %540 = vmatpush1.msra.mxu0 %v487
  %541 = vmatprep.subr.mxu0 0.0
  %542 = vmatpush1.msra.mxu0 %v488
  %543 = vmatprep.subr.mxu0 0.0
  %544 = vmatpush1.msra.mxu0 %v489
  %545 = vmatprep.subr.mxu0 0.0
  %546 = vmatpush1.msra.mxu0 %v495
  %547 = vmatprep.subr.mxu0 0.0
  %548 = vmatpush1.msra.mxu0 0.0
  %549 = vmatprep.subr.mxu0 0.0
  %550 = vmatpush1.msra.mxu0 0.0
  %551 = vmatprep.subr.mxu0 0.0
  %552 = vmatpush1.msra.mxu0 0.0
  %553 = vmatprep.subr.mxu0 0.0
  %554 = vmatpush1.msra.mxu0 0.0
  %555 = vmatprep.subr.mxu0 0.0
  %556 = vmatpush1.msra.mxu0 0.0
  %557 = vmatprep.subr.mxu0 0.0
  %558 = vmatpush1.msra.mxu0 0.0
  %559 = vmatprep.subr.mxu0 0.0
  %560 = vmatpush1.msra.mxu0 0.0
  %561 = vmatprep.mubr.f32.mxu0 %v492
  %562 = vmatmul.mubr.f32.gmra.mrb[0].mxu0 %v463
  %v563 = vpop.f32.mrb[0].mxu0
  %v564 = vadd.f32 0.0, %v563
  %v565 = vpop.f32.mrb[0].mxu0
  %566 = vdwg.mxu0
  %v567 = vadd.f32 %v454, %v564
  %v568 = vrot.slane %v133, 3
  %v569 = vrot.slane %v134, 3
  %v572 = vrot.slane %v223, 2
  %v573 = vrot.slane %v224, 2
  %v576 = vsel %vm232, %v568, %v572
  %v577 = vsel %vm232, %v569, %v573
  %s578 = scalar_lea.vmem %s3, 600
  %v579 = vld [vmem:[%s578] sm:$0xff]
  %v580 = vld [vmem:[%s578 + $0x8] sm:$0xff]
  %v581 = vld [vmem:[%s578 + $0x10] sm:$0xff]
  %v582 = vld [vmem:[%s578 + $0x18] sm:$0xff]
  %v583 = vld [vmem:[%s578 + $0x20] sm:$0xff]
  %v584 = vld [vmem:[%s578 + $0x28] sm:$0xff]
  %v585 = vld [vmem:[%s578 + $0x30] sm:$0xff]
  %v586 = vld [vmem:[%s578 + $0x38] sm:$0xff]
  %v587 = vld [vmem:[%s578 + $0x40] sm:$0xff]
  %v588 = vld [vmem:[%s578 + $0x48] sm:$0xff]
  %v589 = vld [vmem:[%s578 + $0x50] sm:$0xff]
  %v590 = vld [vmem:[%s578 + $0x58] sm:$0xff]
  %v591 = vld [vmem:[%s578 + $0x60] sm:$0xff]
  %v592 = vld [vmem:[%s578 + $0x68] sm:$0xff]
  %v593 = vld [vmem:[%s578 + $0x70] sm:$0xff]
  %v594 = vld [vmem:[%s578 + $0x78] sm:$0xff]
  %v595 = vld [vmem:[%s578 + $0x80] sm:$0xff]
  %v596 = vld [vmem:[%s578 + $0x88] sm:$0xff]
  %v597 = vld [vmem:[%s578 + $0x90] sm:$0xff]
  %v598 = vld [vmem:[%s578 + $0x98] sm:$0xff]
  %v599 = vld [vmem:[%s578 + $0xa0] sm:$0xff]
  %v600 = vld [vmem:[%s578 + $0xa8] sm:$0xff]
  %v601 = vld [vmem:[%s578 + $0xb0] sm:$0xff]
  %v602 = vld [vmem:[%s578 + $0xb8] sm:$0xff]
  %v603 = vld [vmem:[%s578 + $0xc0] sm:$0xf]
  %v605 = vsel %vm260, %v577, 0
  %v608 = vsel %vm55, %v603, 0
  %610 = vmatprep.subr.mxu0 0.0
  %611 = vmatpush1.msra.mxu0 %v579
  %612 = vmatprep.subr.mxu0 0.0
  %613 = vmatpush1.msra.mxu0 %v580
  %614 = vmatprep.subr.mxu0 0.0
  %615 = vmatpush1.msra.mxu0 %v581
  %616 = vmatprep.subr.mxu0 0.0
  %617 = vmatpush1.msra.mxu0 %v582
  %618 = vmatprep.subr.mxu0 0.0
  %619 = vmatpush1.msra.mxu0 %v583
  %620 = vmatprep.subr.mxu0 0.0
  %621 = vmatpush1.msra.mxu0 %v584
  %622 = vmatprep.subr.mxu0 0.0
  %623 = vmatpush1.msra.mxu0 %v585
  %624 = vmatprep.subr.mxu0 0.0
  %625 = vmatpush1.msra.mxu0 %v586
  %626 = vmatprep.subr.mxu0 0.0
  %627 = vmatpush1.msra.mxu0 %v587
  %628 = vmatprep.subr.mxu0 0.0
  %629 = vmatpush1.msra.mxu0 %v588
  %630 = vmatprep.subr.mxu0 0.0
  %631 = vmatpush1.msra.mxu0 %v589
  %632 = vmatprep.subr.mxu0 0.0
  %633 = vmatpush1.msra.mxu0 %v590
  %634 = vmatprep.subr.mxu0 0.0
  %635 = vmatpush1.msra.mxu0 %v591
  %636 = vmatprep.subr.mxu0 0.0
  %637 = vmatpush1.msra.mxu0 %v592
  %638 = vmatprep.subr.mxu0 0.0
  %639 = vmatpush1.msra.mxu0 %v593
  %640 = vmatprep.subr.mxu0 0.0
  %641 = vmatpush1.msra.mxu0 %v594
  %642 = vmatprep.subr.mxu0 0.0
  %643 = vmatpush1.msra.mxu0 %v595
  %644 = vmatprep.subr.mxu0 0.0
  %645 = vmatpush1.msra.mxu0 %v596
  %646 = vmatprep.subr.mxu0 0.0
  %647 = vmatpush1.msra.mxu0 %v597
  %648 = vmatprep.subr.mxu0 0.0
  %649 = vmatpush1.msra.mxu0 %v598
  %650 = vmatprep.subr.mxu0 0.0
  %651 = vmatpush1.msra.mxu0 %v599
  %652 = vmatprep.subr.mxu0 0.0
  %653 = vmatpush1.msra.mxu0 %v600
  %654 = vmatprep.subr.mxu0 0.0
  %655 = vmatpush1.msra.mxu0 %v601
  %656 = vmatprep.subr.mxu0 0.0
  %657 = vmatpush1.msra.mxu0 %v602
  %658 = vmatprep.subr.mxu0 0.0
  %659 = vmatpush1.msra.mxu0 %v608
  %660 = vmatprep.subr.mxu0 0.0
  %661 = vmatpush1.msra.mxu0 0.0
  %662 = vmatprep.subr.mxu0 0.0
  %663 = vmatpush1.msra.mxu0 0.0
  %664 = vmatprep.subr.mxu0 0.0
  %665 = vmatpush1.msra.mxu0 0.0
  %666 = vmatprep.subr.mxu0 0.0
  %667 = vmatpush1.msra.mxu0 0.0
  %668 = vmatprep.subr.mxu0 0.0
  %669 = vmatpush1.msra.mxu0 0.0
  %670 = vmatprep.subr.mxu0 0.0
  %671 = vmatpush1.msra.mxu0 0.0
  %672 = vmatprep.subr.mxu0 0.0
  %673 = vmatpush1.msra.mxu0 0.0
  %674 = vmatprep.mubr.f32.mxu0 %v605
  %675 = vmatmul.mubr.f32.gmra.mrb[0].mxu0 %v576
  %v676 = vpop.f32.mrb[0].mxu0
  %v677 = vadd.f32 0.0, %v676
  %v678 = vpop.f32.mrb[0].mxu0
  %679 = vdwg.mxu0
  %v680 = vadd.f32 %v567, %v677
  %v681 = vrot.slane %v133, 4
  %v682 = vrot.slane %v134, 4
  %v685 = vrot.slane %v223, 3
  %v686 = vrot.slane %v224, 3
  %v689 = vsel %vm232, %v681, %v685
  %v690 = vsel %vm232, %v682, %v686
  %s691 = scalar_lea.vmem %s3, 800
  %v692 = vld [vmem:[%s691] sm:$0xff]
  %v693 = vld [vmem:[%s691 + $0x8] sm:$0xff]
  %v694 = vld [vmem:[%s691 + $0x10] sm:$0xff]
  %v695 = vld [vmem:[%s691 + $0x18] sm:$0xff]
  %v696 = vld [vmem:[%s691 + $0x20] sm:$0xff]
  %v697 = vld [vmem:[%s691 + $0x28] sm:$0xff]
  %v698 = vld [vmem:[%s691 + $0x30] sm:$0xff]
  %v699 = vld [vmem:[%s691 + $0x38] sm:$0xff]
  %v700 = vld [vmem:[%s691 + $0x40] sm:$0xff]
  %v701 = vld [vmem:[%s691 + $0x48] sm:$0xff]
  %v702 = vld [vmem:[%s691 + $0x50] sm:$0xff]
  %v703 = vld [vmem:[%s691 + $0x58] sm:$0xff]
  %v704 = vld [vmem:[%s691 + $0x60] sm:$0xff]
  %v705 = vld [vmem:[%s691 + $0x68] sm:$0xff]
  %v706 = vld [vmem:[%s691 + $0x70] sm:$0xff]
  %v707 = vld [vmem:[%s691 + $0x78] sm:$0xff]
  %v708 = vld [vmem:[%s691 + $0x80] sm:$0xff]
  %v709 = vld [vmem:[%s691 + $0x88] sm:$0xff]
  %v710 = vld [vmem:[%s691 + $0x90] sm:$0xff]
  %v711 = vld [vmem:[%s691 + $0x98] sm:$0xff]
  %v712 = vld [vmem:[%s691 + $0xa0] sm:$0xff]
  %v713 = vld [vmem:[%s691 + $0xa8] sm:$0xff]
  %v714 = vld [vmem:[%s691 + $0xb0] sm:$0xff]
  %v715 = vld [vmem:[%s691 + $0xb8] sm:$0xff]
  %v716 = vld [vmem:[%s691 + $0xc0] sm:$0xf]
  %v718 = vsel %vm260, %v690, 0
  %v721 = vsel %vm55, %v716, 0
  %723 = vmatprep.subr.mxu0 0.0
  %724 = vmatpush1.msra.mxu0 %v692
  %725 = vmatprep.subr.mxu0 0.0
  %726 = vmatpush1.msra.mxu0 %v693
  %727 = vmatprep.subr.mxu0 0.0
  %728 = vmatpush1.msra.mxu0 %v694
  %729 = vmatprep.subr.mxu0 0.0
  %730 = vmatpush1.msra.mxu0 %v695
  %731 = vmatprep.subr.mxu0 0.0
  %732 = vmatpush1.msra.mxu0 %v696
  %733 = vmatprep.subr.mxu0 0.0
  %734 = vmatpush1.msra.mxu0 %v697
  %735 = vmatprep.subr.mxu0 0.0
  %736 = vmatpush1.msra.mxu0 %v698
  %737 = vmatprep.subr.mxu0 0.0
  %738 = vmatpush1.msra.mxu0 %v699
  %739 = vmatprep.subr.mxu0 0.0
  %740 = vmatpush1.msra.mxu0 %v700
  %741 = vmatprep.subr.mxu0 0.0
  %742 = vmatpush1.msra.mxu0 %v701
  %743 = vmatprep.subr.mxu0 0.0
  %744 = vmatpush1.msra.mxu0 %v702
  %745 = vmatprep.subr.mxu0 0.0
  %746 = vmatpush1.msra.mxu0 %v703
  %747 = vmatprep.subr.mxu0 0.0
  %748 = vmatpush1.msra.mxu0 %v704
  %749 = vmatprep.subr.mxu0 0.0
  %750 = vmatpush1.msra.mxu0 %v705
  %751 = vmatprep.subr.mxu0 0.0
  %752 = vmatpush1.msra.mxu0 %v706
  %753 = vmatprep.subr.mxu0 0.0
  %754 = vmatpush1.msra.mxu0 %v707
  %755 = vmatprep.subr.mxu0 0.0
  %756 = vmatpush1.msra.mxu0 %v708
  %757 = vmatprep.subr.mxu0 0.0
  %758 = vmatpush1.msra.mxu0 %v709
  %759 = vmatprep.subr.mxu0 0.0
  %760 = vmatpush1.msra.mxu0 %v710
  %761 = vmatprep.subr.mxu0 0.0
  %762 = vmatpush1.msra.mxu0 %v711
  %763 = vmatprep.subr.mxu0 0.0
  %764 = vmatpush1.msra.mxu0 %v712
  %765 = vmatprep.subr.mxu0 0.0
  %766 = vmatpush1.msra.mxu0 %v713
  %767 = vmatprep.subr.mxu0 0.0
  %768 = vmatpush1.msra.mxu0 %v714
  %769 = vmatprep.subr.mxu0 0.0
  %770 = vmatpush1.msra.mxu0 %v715
  %771 = vmatprep.subr.mxu0 0.0
  %772 = vmatpush1.msra.mxu0 %v721
  %773 = vmatprep.subr.mxu0 0.0
  %774 = vmatpush1.msra.mxu0 0.0
  %775 = vmatprep.subr.mxu0 0.0
  %776 = vmatpush1.msra.mxu0 0.0
  %777 = vmatprep.subr.mxu0 0.0
  %778 = vmatpush1.msra.mxu0 0.0
  %779 = vmatprep.subr.mxu0 0.0
  %780 = vmatpush1.msra.mxu0 0.0
  %781 = vmatprep.subr.mxu0 0.0
  %782 = vmatpush1.msra.mxu0 0.0
  %783 = vmatprep.subr.mxu0 0.0
  %784 = vmatpush1.msra.mxu0 0.0
  %785 = vmatprep.subr.mxu0 0.0
  %786 = vmatpush1.msra.mxu0 0.0
  %787 = vmatprep.mubr.f32.mxu0 %v718
  %788 = vmatmul.mubr.f32.gmra.mrb[0].mxu0 %v689
  %v789 = vpop.f32.mrb[0].mxu0
  %v790 = vadd.f32 0.0, %v789
  %v791 = vpop.f32.mrb[0].mxu0
  %792 = vdwg.mxu0
  %v793 = vadd.f32 %v680, %v790
  %v794 = vrot.slane %v133, 5
  %v795 = vrot.slane %v134, 5
  %v798 = vrot.slane %v223, 4
  %v799 = vrot.slane %v224, 4
  %v802 = vsel %vm232, %v794, %v798
  %v803 = vsel %vm232, %v795, %v799
  %s804 = scalar_lea.vmem %s3, 1000
  %v805 = vld [vmem:[%s804] sm:$0xff]
  %v806 = vld [vmem:[%s804 + $0x8] sm:$0xff]
  %v807 = vld [vmem:[%s804 + $0x10] sm:$0xff]
  %v808 = vld [vmem:[%s804 + $0x18] sm:$0xff]
  %v809 = vld [vmem:[%s804 + $0x20] sm:$0xff]
  %v810 = vld [vmem:[%s804 + $0x28] sm:$0xff]
  %v811 = vld [vmem:[%s804 + $0x30] sm:$0xff]
  %v812 = vld [vmem:[%s804 + $0x38] sm:$0xff]
  %v813 = vld [vmem:[%s804 + $0x40] sm:$0xff]
  %v814 = vld [vmem:[%s804 + $0x48] sm:$0xff]
  %v815 = vld [vmem:[%s804 + $0x50] sm:$0xff]
  %v816 = vld [vmem:[%s804 + $0x58] sm:$0xff]
  %v817 = vld [vmem:[%s804 + $0x60] sm:$0xff]
  %v818 = vld [vmem:[%s804 + $0x68] sm:$0xff]
  %v819 = vld [vmem:[%s804 + $0x70] sm:$0xff]
  %v820 = vld [vmem:[%s804 + $0x78] sm:$0xff]
  %v821 = vld [vmem:[%s804 + $0x80] sm:$0xff]
  %v822 = vld [vmem:[%s804 + $0x88] sm:$0xff]
  %v823 = vld [vmem:[%s804 + $0x90] sm:$0xff]
  %v824 = vld [vmem:[%s804 + $0x98] sm:$0xff]
  %v825 = vld [vmem:[%s804 + $0xa0] sm:$0xff]
  %v826 = vld [vmem:[%s804 + $0xa8] sm:$0xff]
  %v827 = vld [vmem:[%s804 + $0xb0] sm:$0xff]
  %v828 = vld [vmem:[%s804 + $0xb8] sm:$0xff]
  %v829 = vld [vmem:[%s804 + $0xc0] sm:$0xf]
  %v831 = vsel %vm260, %v803, 0
  %v834 = vsel %vm55, %v829, 0
  %836 = vmatprep.subr.mxu0 0.0
  %837 = vmatpush1.msra.mxu0 %v805
  %838 = vmatprep.subr.mxu0 0.0
  %839 = vmatpush1.msra.mxu0 %v806
  %840 = vmatprep.subr.mxu0 0.0
  %841 = vmatpush1.msra.mxu0 %v807
  %842 = vmatprep.subr.mxu0 0.0
  %843 = vmatpush1.msra.mxu0 %v808
  %844 = vmatprep.subr.mxu0 0.0
  %845 = vmatpush1.msra.mxu0 %v809
  %846 = vmatprep.subr.mxu0 0.0
  %847 = vmatpush1.msra.mxu0 %v810
  %848 = vmatprep.subr.mxu0 0.0
  %849 = vmatpush1.msra.mxu0 %v811
  %850 = vmatprep.subr.mxu0 0.0
  %851 = vmatpush1.msra.mxu0 %v812
  %852 = vmatprep.subr.mxu0 0.0
  %853 = vmatpush1.msra.mxu0 %v813
  %854 = vmatprep.subr.mxu0 0.0
  %855 = vmatpush1.msra.mxu0 %v814
  %856 = vmatprep.subr.mxu0 0.0
  %857 = vmatpush1.msra.mxu0 %v815
  %858 = vmatprep.subr.mxu0 0.0
  %859 = vmatpush1.msra.mxu0 %v816
  %860 = vmatprep.subr.mxu0 0.0
  %861 = vmatpush1.msra.mxu0 %v817
  %862 = vmatprep.subr.mxu0 0.0
  %863 = vmatpush1.msra.mxu0 %v818
  %864 = vmatprep.subr.mxu0 0.0
  %865 = vmatpush1.msra.mxu0 %v819
  %866 = vmatprep.subr.mxu0 0.0
  %867 = vmatpush1.msra.mxu0 %v820
  %868 = vmatprep.subr.mxu0 0.0
  %869 = vmatpush1.msra.mxu0 %v821
  %870 = vmatprep.subr.mxu0 0.0
  %871 = vmatpush1.msra.mxu0 %v822
  %872 = vmatprep.subr.mxu0 0.0
  %873 = vmatpush1.msra.mxu0 %v823
  %874 = vmatprep.subr.mxu0 0.0
  %875 = vmatpush1.msra.mxu0 %v824
  %876 = vmatprep.subr.mxu0 0.0
  %877 = vmatpush1.msra.mxu0 %v825
  %878 = vmatprep.subr.mxu0 0.0
  %879 = vmatpush1.msra.mxu0 %v826
  %880 = vmatprep.subr.mxu0 0.0
  %881 = vmatpush1.msra.mxu0 %v827
  %882 = vmatprep.subr.mxu0 0.0
  %883 = vmatpush1.msra.mxu0 %v828
  %884 = vmatprep.subr.mxu0 0.0
  %885 = vmatpush1.msra.mxu0 %v834
  %886 = vmatprep.subr.mxu0 0.0
  %887 = vmatpush1.msra.mxu0 0.0
  %888 = vmatprep.subr.mxu0 0.0
  %889 = vmatpush1.msra.mxu0 0.0
  %890 = vmatprep.subr.mxu0 0.0
  %891 = vmatpush1.msra.mxu0 0.0
  %892 = vmatprep.subr.mxu0 0.0
  %893 = vmatpush1.msra.mxu0 0.0
  %894 = vmatprep.subr.mxu0 0.0
  %895 = vmatpush1.msra.mxu0 0.0
  %896 = vmatprep.subr.mxu0 0.0
  %897 = vmatpush1.msra.mxu0 0.0
  %898 = vmatprep.subr.mxu0 0.0
  %899 = vmatpush1.msra.mxu0 0.0
  %900 = vmatprep.mubr.f32.mxu0 %v831
  %901 = vmatmul.mubr.f32.gmra.mrb[0].mxu0 %v802
  %v902 = vpop.f32.mrb[0].mxu0
  %v903 = vadd.f32 0.0, %v902
  %v904 = vpop.f32.mrb[0].mxu0
  %905 = vdwg.mxu0
  %v906 = vadd.f32 %v793, %v903
  %v907 = vrot.slane %v133, 6
  %v908 = vrot.slane %v134, 6
  %v911 = vrot.slane %v223, 5
  %v912 = vrot.slane %v224, 5
  %v915 = vsel %vm232, %v907, %v911
  %v916 = vsel %vm232, %v908, %v912
  %s917 = scalar_lea.vmem %s3, 1200
  %v918 = vld [vmem:[%s917] sm:$0xff]
  %v919 = vld [vmem:[%s917 + $0x8] sm:$0xff]
  %v920 = vld [vmem:[%s917 + $0x10] sm:$0xff]
  %v921 = vld [vmem:[%s917 + $0x18] sm:$0xff]
  %v922 = vld [vmem:[%s917 + $0x20] sm:$0xff]
  %v923 = vld [vmem:[%s917 + $0x28] sm:$0xff]
  %v924 = vld [vmem:[%s917 + $0x30] sm:$0xff]
  %v925 = vld [vmem:[%s917 + $0x38] sm:$0xff]
  %v926 = vld [vmem:[%s917 + $0x40] sm:$0xff]
  %v927 = vld [vmem:[%s917 + $0x48] sm:$0xff]
  %v928 = vld [vmem:[%s917 + $0x50] sm:$0xff]
  %v929 = vld [vmem:[%s917 + $0x58] sm:$0xff]
  %v930 = vld [vmem:[%s917 + $0x60] sm:$0xff]
  %v931 = vld [vmem:[%s917 + $0x68] sm:$0xff]
  %v932 = vld [vmem:[%s917 + $0x70] sm:$0xff]
  %v933 = vld [vmem:[%s917 + $0x78] sm:$0xff]
  %v934 = vld [vmem:[%s917 + $0x80] sm:$0xff]
  %v935 = vld [vmem:[%s917 + $0x88] sm:$0xff]
  %v936 = vld [vmem:[%s917 + $0x90] sm:$0xff]
  %v937 = vld [vmem:[%s917 + $0x98] sm:$0xff]
  %v938 = vld [vmem:[%s917 + $0xa0] sm:$0xff]
  %v939 = vld [vmem:[%s917 + $0xa8] sm:$0xff]
  %v940 = vld [vmem:[%s917 + $0xb0] sm:$0xff]
  %v941 = vld [vmem:[%s917 + $0xb8] sm:$0xff]
  %v942 = vld [vmem:[%s917 + $0xc0] sm:$0xf]
  %v944 = vsel %vm260, %v916, 0
  %v947 = vsel %vm55, %v942, 0
  %949 = vmatprep.subr.mxu0 0.0
  %950 = vmatpush1.msra.mxu0 %v918
  %951 = vmatprep.subr.mxu0 0.0
  %952 = vmatpush1.msra.mxu0 %v919
  %953 = vmatprep.subr.mxu0 0.0
  %954 = vmatpush1.msra.mxu0 %v920
  %955 = vmatprep.subr.mxu0 0.0
  %956 = vmatpush1.msra.mxu0 %v921
  %957 = vmatprep.subr.mxu0 0.0
  %958 = vmatpush1.msra.mxu0 %v922
  %959 = vmatprep.subr.mxu0 0.0
  %960 = vmatpush1.msra.mxu0 %v923
  %961 = vmatprep.subr.mxu0 0.0
  %962 = vmatpush1.msra.mxu0 %v924
  %963 = vmatprep.subr.mxu0 0.0
  %964 = vmatpush1.msra.mxu0 %v925
  %965 = vmatprep.subr.mxu0 0.0
  %966 = vmatpush1.msra.mxu0 %v926
  %967 = vmatprep.subr.mxu0 0.0
  %968 = vmatpush1.msra.mxu0 %v927
  %969 = vmatprep.subr.mxu0 0.0
  %970 = vmatpush1.msra.mxu0 %v928
  %971 = vmatprep.subr.mxu0 0.0
  %972 = vmatpush1.msra.mxu0 %v929
  %973 = vmatprep.subr.mxu0 0.0
  %974 = vmatpush1.msra.mxu0 %v930
  %975 = vmatprep.subr.mxu0 0.0
  %976 = vmatpush1.msra.mxu0 %v931
  %977 = vmatprep.subr.mxu0 0.0
  %978 = vmatpush1.msra.mxu0 %v932
  %979 = vmatprep.subr.mxu0 0.0
  %980 = vmatpush1.msra.mxu0 %v933
  %981 = vmatprep.subr.mxu0 0.0
  %982 = vmatpush1.msra.mxu0 %v934
  %983 = vmatprep.subr.mxu0 0.0
  %984 = vmatpush1.msra.mxu0 %v935
  %985 = vmatprep.subr.mxu0 0.0
  %986 = vmatpush1.msra.mxu0 %v936
  %987 = vmatprep.subr.mxu0 0.0
  %988 = vmatpush1.msra.mxu0 %v937
  %989 = vmatprep.subr.mxu0 0.0
  %990 = vmatpush1.msra.mxu0 %v938
  %991 = vmatprep.subr.mxu0 0.0
  %992 = vmatpush1.msra.mxu0 %v939
  %993 = vmatprep.subr.mxu0 0.0
  %994 = vmatpush1.msra.mxu0 %v940
  %995 = vmatprep.subr.mxu0 0.0
  %996 = vmatpush1.msra.mxu0 %v941
  %997 = vmatprep.subr.mxu0 0.0
  %998 = vmatpush1.msra.mxu0 %v947
  %999 = vmatprep.subr.mxu0 0.0
  %1000 = vmatpush1.msra.mxu0 0.0
  %1001 = vmatprep.subr.mxu0 0.0
  %1002 = vmatpush1.msra.mxu0 0.0
  %1003 = vmatprep.subr.mxu0 0.0
  %1004 = vmatpush1.msra.mxu0 0.0
  %1005 = vmatprep.subr.mxu0 0.0
  %1006 = vmatpush1.msra.mxu0 0.0
  %1007 = vmatprep.subr.mxu0 0.0
  %1008 = vmatpush1.msra.mxu0 0.0
  %1009 = vmatprep.subr.mxu0 0.0
  %1010 = vmatpush1.msra.mxu0 0.0
  %1011 = vmatprep.subr.mxu0 0.0
  %1012 = vmatpush1.msra.mxu0 0.0
  %1013 = vmatprep.mubr.f32.mxu0 %v944
  %1014 = vmatmul.mubr.f32.gmra.mrb[0].mxu0 %v915
  %v1015 = vpop.f32.mrb[0].mxu0
  %v1016 = vadd.f32 0.0, %v1015
  %v1017 = vpop.f32.mrb[0].mxu0
  %1018 = vdwg.mxu0
  %v1019 = vadd.f32 %v906, %v1016
  %v1020 = vrot.slane %v133, 7
  %v1021 = vrot.slane %v134, 7
  %v1024 = vrot.slane %v223, 6
  %v1025 = vrot.slane %v224, 6
  %v1028 = vsel %vm232, %v1020, %v1024
  %v1029 = vsel %vm232, %v1021, %v1025
  %s1030 = scalar_lea.vmem %s3, 1400
  %v1031 = vld [vmem:[%s1030] sm:$0xff]
  %v1032 = vld [vmem:[%s1030 + $0x8] sm:$0xff]
  %v1033 = vld [vmem:[%s1030 + $0x10] sm:$0xff]
  %v1034 = vld [vmem:[%s1030 + $0x18] sm:$0xff]
  %v1035 = vld [vmem:[%s1030 + $0x20] sm:$0xff]
  %v1036 = vld [vmem:[%s1030 + $0x28] sm:$0xff]
  %v1037 = vld [vmem:[%s1030 + $0x30] sm:$0xff]
  %v1038 = vld [vmem:[%s1030 + $0x38] sm:$0xff]
  %v1039 = vld [vmem:[%s1030 + $0x40] sm:$0xff]
  %v1040 = vld [vmem:[%s1030 + $0x48] sm:$0xff]
  %v1041 = vld [vmem:[%s1030 + $0x50] sm:$0xff]
  %v1042 = vld [vmem:[%s1030 + $0x58] sm:$0xff]
  %v1043 = vld [vmem:[%s1030 + $0x60] sm:$0xff]
  %v1044 = vld [vmem:[%s1030 + $0x68] sm:$0xff]
  %v1045 = vld [vmem:[%s1030 + $0x70] sm:$0xff]
  %v1046 = vld [vmem:[%s1030 + $0x78] sm:$0xff]
  %v1047 = vld [vmem:[%s1030 + $0x80] sm:$0xff]
  %v1048 = vld [vmem:[%s1030 + $0x88] sm:$0xff]
  %v1049 = vld [vmem:[%s1030 + $0x90] sm:$0xff]
  %v1050 = vld [vmem:[%s1030 + $0x98] sm:$0xff]
  %v1051 = vld [vmem:[%s1030 + $0xa0] sm:$0xff]
  %v1052 = vld [vmem:[%s1030 + $0xa8] sm:$0xff]
  %v1053 = vld [vmem:[%s1030 + $0xb0] sm:$0xff]
  %v1054 = vld [vmem:[%s1030 + $0xb8] sm:$0xff]
  %v1055 = vld [vmem:[%s1030 + $0xc0] sm:$0xf]
  %v1057 = vsel %vm260, %v1029, 0
  %v1060 = vsel %vm55, %v1055, 0
  %1062 = vmatprep.subr.mxu0 0.0
  %1063 = vmatpush1.msra.mxu0 %v1031
  %1064 = vmatprep.subr.mxu0 0.0
  %1065 = vmatpush1.msra.mxu0 %v1032
  %1066 = vmatprep.subr.mxu0 0.0
  %1067 = vmatpush1.msra.mxu0 %v1033
  %1068 = vmatprep.subr.mxu0 0.0
  %1069 = vmatpush1.msra.mxu0 %v1034
  %1070 = vmatprep.subr.mxu0 0.0
  %1071 = vmatpush1.msra.mxu0 %v1035
  %1072 = vmatprep.subr.mxu0 0.0
  %1073 = vmatpush1.msra.mxu0 %v1036
  %1074 = vmatprep.subr.mxu0 0.0
  %1075 = vmatpush1.msra.mxu0 %v1037
  %1076 = vmatprep.subr.mxu0 0.0
  %1077 = vmatpush1.msra.mxu0 %v1038
  %1078 = vmatprep.subr.mxu0 0.0
  %1079 = vmatpush1.msra.mxu0 %v1039
  %1080 = vmatprep.subr.mxu0 0.0
  %1081 = vmatpush1.msra.mxu0 %v1040
  %1082 = vmatprep.subr.mxu0 0.0
  %1083 = vmatpush1.msra.mxu0 %v1041
  %1084 = vmatprep.subr.mxu0 0.0
  %1085 = vmatpush1.msra.mxu0 %v1042
  %1086 = vmatprep.subr.mxu0 0.0
  %1087 = vmatpush1.msra.mxu0 %v1043
  %1088 = vmatprep.subr.mxu0 0.0
  %1089 = vmatpush1.msra.mxu0 %v1044
  %1090 = vmatprep.subr.mxu0 0.0
  %1091 = vmatpush1.msra.mxu0 %v1045
  %1092 = vmatprep.subr.mxu0 0.0
  %1093 = vmatpush1.msra.mxu0 %v1046
  %1094 = vmatprep.subr.mxu0 0.0
  %1095 = vmatpush1.msra.mxu0 %v1047
  %1096 = vmatprep.subr.mxu0 0.0
  %1097 = vmatpush1.msra.mxu0 %v1048
  %1098 = vmatprep.subr.mxu0 0.0
  %1099 = vmatpush1.msra.mxu0 %v1049
  %1100 = vmatprep.subr.mxu0 0.0
  %1101 = vmatpush1.msra.mxu0 %v1050
  %1102 = vmatprep.subr.mxu0 0.0
  %1103 = vmatpush1.msra.mxu0 %v1051
  %1104 = vmatprep.subr.mxu0 0.0
  %1105 = vmatpush1.msra.mxu0 %v1052
  %1106 = vmatprep.subr.mxu0 0.0
  %1107 = vmatpush1.msra.mxu0 %v1053
  %1108 = vmatprep.subr.mxu0 0.0
  %1109 = vmatpush1.msra.mxu0 %v1054
  %1110 = vmatprep.subr.mxu0 0.0
  %1111 = vmatpush1.msra.mxu0 %v1060
  %1112 = vmatprep.subr.mxu0 0.0
  %1113 = vmatpush1.msra.mxu0 0.0
  %1114 = vmatprep.subr.mxu0 0.0
  %1115 = vmatpush1.msra.mxu0 0.0
  %1116 = vmatprep.subr.mxu0 0.0
  %1117 = vmatpush1.msra.mxu0 0.0
  %1118 = vmatprep.subr.mxu0 0.0
  %1119 = vmatpush1.msra.mxu0 0.0
  %1120 = vmatprep.subr.mxu0 0.0
  %1121 = vmatpush1.msra.mxu0 0.0
  %1122 = vmatprep.subr.mxu0 0.0
  %1123 = vmatpush1.msra.mxu0 0.0
  %1124 = vmatprep.subr.mxu0 0.0
  %1125 = vmatpush1.msra.mxu0 0.0
  %1126 = vmatprep.mubr.f32.mxu0 %v1057
  %1127 = vmatmul.mubr.f32.gmra.mrb[0].mxu0 %v1028
  %v1128 = vpop.f32.mrb[0].mxu0
  %v1129 = vadd.f32 0.0, %v1128
  %v1130 = vpop.f32.mrb[0].mxu0
  %1131 = vdwg.mxu0
  %v1132 = vadd.f32 %v1019, %v1129
  %v1133 = vtanh.pop %v1132
  %v1134 = vld [vmem:[%s5] sm:$0xff]
  %v1135 = vld [vmem:[%s5 + $0x8] sm:$0xff]
  %v1136 = vld [vmem:[%s5 + $0x10] sm:$0xff]
  %v1137 = vld [vmem:[%s5 + $0x18] sm:$0xff]
  %v1138 = vld [vmem:[%s5 + $0x20] sm:$0xff]
  %v1139 = vld [vmem:[%s5 + $0x28] sm:$0xff]
  %v1140 = vld [vmem:[%s5 + $0x30] sm:$0xff]
  %v1141 = vld [vmem:[%s5 + $0x38] sm:$0xff]
  %v1142 = vld [vmem:[%s6] sm:$0x1]
  %v1144 = vlaneseq
  %v1145 = vshrl.u32 %v1144, 7
  %v1146 = vsub.s32 0, %v1145
  %v1147 = vrot.slane %v1142, %v1146
  %vm1149 = vcmask 523264
  %v1151 = vsel %vm1149, %v1133, 0
  %1153 = vmatprep.subr.mxu0 0.0
  %1154 = vmatpush1.msra.mxu0 %v1134
  %1155 = vmatprep.subr.mxu0 0.0
  %1156 = vmatpush1.msra.mxu0 %v1135
  %1157 = vmatprep.subr.mxu0 0.0
  %1158 = vmatpush1.msra.mxu0 %v1136
  %1159 = vmatprep.subr.mxu0 0.0
  %1160 = vmatpush1.msra.mxu0 %v1137
  %1161 = vmatprep.subr.mxu0 0.0
  %1162 = vmatpush1.msra.mxu0 %v1138
  %1163 = vmatprep.subr.mxu0 0.0
  %1164 = vmatpush1.msra.mxu0 %v1139
  %1165 = vmatprep.subr.mxu0 0.0
  %1166 = vmatpush1.msra.mxu0 %v1140
  %1167 = vmatprep.subr.mxu0 0.0
  %1168 = vmatpush1.msra.mxu0 %v1141
  %1169 = vmatprep.subr.mxu0 0.0
  %1170 = vmatpush1.msra.mxu0 0.0
  %1171 = vmatprep.subr.mxu0 0.0
  %1172 = vmatpush1.msra.mxu0 0.0
  %1173 = vmatprep.subr.mxu0 0.0
  %1174 = vmatpush1.msra.mxu0 0.0
  %1175 = vmatprep.subr.mxu0 0.0
  %1176 = vmatpush1.msra.mxu0 0.0
  %1177 = vmatprep.subr.mxu0 0.0
  %1178 = vmatpush1.msra.mxu0 0.0
  %1179 = vmatprep.subr.mxu0 0.0
  %1180 = vmatpush1.msra.mxu0 0.0
  %1181 = vmatprep.subr.mxu0 0.0
  %1182 = vmatpush1.msra.mxu0 0.0
  %1183 = vmatprep.subr.mxu0 0.0
  %1184 = vmatpush1.msra.mxu0 0.0
  %1185 = vmatprep.subr.mxu0 0.0
  %1186 = vmatpush1.msra.mxu0 0.0
  %1187 = vmatprep.subr.mxu0 0.0
  %1188 = vmatpush1.msra.mxu0 0.0
  %1189 = vmatprep.subr.mxu0 0.0
  %1190 = vmatpush1.msra.mxu0 0.0
  %1191 = vmatprep.subr.mxu0 0.0
  %1192 = vmatpush1.msra.mxu0 0.0
  %1193 = vmatprep.subr.mxu0 0.0
  %1194 = vmatpush1.msra.mxu0 0.0
  %1195 = vmatprep.subr.mxu0 0.0
  %1196 = vmatpush1.msra.mxu0 0.0
  %1197 = vmatprep.subr.mxu0 0.0
  %1198 = vmatpush1.msra.mxu0 0.0
  %1199 = vmatprep.subr.mxu0 0.0
  %1200 = vmatpush1.msra.mxu0 0.0
  %1201 = vmatprep.subr.mxu0 0.0
  %1202 = vmatpush1.msra.mxu0 0.0
  %1203 = vmatprep.subr.mxu0 0.0
  %1204 = vmatpush1.msra.mxu0 0.0
  %1205 = vmatprep.subr.mxu0 0.0
  %1206 = vmatpush1.msra.mxu0 0.0
  %1207 = vmatprep.subr.mxu0 0.0
  %1208 = vmatpush1.msra.mxu0 0.0
  %1209 = vmatprep.subr.mxu0 0.0
  %1210 = vmatpush1.msra.mxu0 0.0
  %1211 = vmatprep.subr.mxu0 0.0
  %1212 = vmatpush1.msra.mxu0 0.0
  %1213 = vmatprep.subr.mxu0 0.0
  %1214 = vmatpush1.msra.mxu0 0.0
  %1215 = vmatprep.subr.mxu0 0.0
  %1216 = vmatpush1.msra.mxu0 0.0
  %1217 = vmatprep.mubr.f32.mxu0 0.0
  %1218 = vmatmul.mubr.f32.gmra.mrb[0].mxu0 %v1151
  %v1219 = vpop.f32.mrb[0].mxu0
  %v1220 = vadd.f32 %v1147, %v1219
  %v1221 = vpop.f32.mrb[0].mxu0
  %1222 = vdwg.mxu0
  %v1223 = vtanh.pop %v1220
  %v1224 = vld [vmem:[%s7] sm:$0x1]
  %v1226 = vlaneseq
  %v1227 = vshrl.u32 %v1226, 7
  %v1228 = vsub.s32 0, %v1227
  %v1229 = vrot.slane %v1224, %v1228
  %v1231 = vmul.f32 %v1223, %v1229
  %vm1232 = vcmask 254976
  %v1233 = vsel %vm1232, %v1231, 0.0
  %1234 = vadd.xlane.f32.xlu0 %v1233
  %v1235 = vpop.xlane.xlu0 %1234
  %v1236 = vld [vmem:[#allocation2] sm:$0x1]
  %v1238 = vlaneseq
  %v1239 = vshrl.u32 %v1238, 7
  %v1240 = vsub.s32 0, %v1239
  %v1241 = vrot.slane %v1236, %v1240
  %v1243 = vadd.f32 %v1235, %v1241
  %vm1244 = vcmask 1024
  %1245 = vst.msk [vmem:[%s9] sm:$0x3] %vm1244, %v1243
  // Predicated region
  $region38: #{mlp_value_forward.1} parent=0 // pred_check
    _
  $region39: #{mlp_value_forward.1} parent=0 // pred_check_branch
    %1247 = sbr.rel (0) target = $region41
  $region40: #{mlp_value_forward.1} parent=0 // pred_region
    _
  $region41: #{mlp_value_forward.1} parent=0 // pred_fallthru
    _
  // Predicated region
  $region42: #{mlp_value_forward.1} parent=0 // pred_check
    _
  $region43: #{mlp_value_forward.1} parent=0 // pred_check_branch
    %1249 = sbr.rel (0) target = $region45
  $region44: #{mlp_value_forward.1} parent=0 // pred_region
    _
  $region45: #{mlp_value_forward.1} parent=0 // pred_fallthru
    _

</llo_original>
